<compile_context>
chip_gen: v5e
topology: v5e:2x2
jax: 0.10.0
libtpu: 0.0.40
codegen_flags: <defaults>
</compile_context>

<pallas_src>
import functools

import jax
import jax.numpy as jnp
import numpy as np
from jax.experimental import pallas as pl
from jax.experimental.pallas import tpu as pltpu

# Finite "masked" fill. Combined with the post-softmax re-masking this is
# numerically identical to the torch -inf masked_fill, but never produces
# NaN/Inf for fully-masked rows.
_NEG_BIG = -1e30
_VMEM_LIMIT = 64 * 1024 * 1024


def _ln_qkv_kernel(hid_ref, lnw_ref, wqkv_ref, q_ref, k_ref, v_ref, *,
                   num_heads, dim_head, eps):
    """RMS-LayerNorm + fused QKV projection for one (batch, q-tile) block.

    Writes q/k/v head-major as (1, H, tq, Dh) bf16 blocks.
    """
    h = hid_ref[0]                                            # (tq, D) f32
    var = jnp.mean(h * h, axis=-1, keepdims=True)
    x = (h * jax.lax.rsqrt(var + eps) * lnw_ref[...]).astype(jnp.bfloat16)
    # One wide MXU call: (tq, D) @ (D, 3*H*Dh), f32 accumulation.
    qkv = jnp.dot(x, wqkv_ref[...], preferred_element_type=jnp.float32)

    hd = num_heads * dim_head
    for hh in range(num_heads):
        lo = hh * dim_head
        hi = lo + dim_head
        q_ref[0, hh] = qkv[:, lo:hi].astype(jnp.bfloat16)
        k_ref[0, hh] = qkv[:, hd + lo:hd + hi].astype(jnp.bfloat16)
        v_ref[0, hh] = qkv[:, 2 * hd + lo:2 * hd + hi].astype(jnp.bfloat16)


def _flash_attn_kernel(blk_ref, hid_ref, q_ref, k_ref, v_ref, mask_ref, wo_ref,
                       out_ref, m_sc, l_sc, acc_sc, *, num_heads):
    """Flash-style online-softmax attention, all heads batched, plus fused
    output projection and residual add at the last kv step.

    blk_ref is the scalar-prefetched (SMEM) flat int32 indicator: >0 iff any
    position in this (batch, q-tile, kv-tile) block is unmasked."""
    b = pl.program_id(0)
    qi = pl.program_id(1)
    ki = pl.program_id(2)
    nq = pl.num_programs(1)
    nk = pl.num_programs(2)

    @pl.when(ki == 0)
    def _init():
        m_sc[...] = jnp.full_like(m_sc, _NEG_BIG)
        l_sc[...] = jnp.zeros_like(l_sc)
        acc_sc[...] = jnp.zeros_like(acc_sc)

    # Skip all compute for fully-masked tiles (contributes exactly nothing to
    # the online-softmax state, so skipping is a mathematical no-op).
    @pl.when(blk_ref[(b * nq + qi) * nk + ki] > 0)
    def _compute():
        q = q_ref[0]                                   # (H, tq, Dh) bf16
        k = k_ref[0]                                   # (H, tk, Dh) bf16
        v = v_ref[0]                                   # (H, tk, Dh) bf16
        keep = mask_ref[0].astype(jnp.float32) > 0.0   # (tq, tk) bool

        # attn_scale=False in the reference module -> no 1/sqrt(dim_head) scale.
        s = jnp.einsum('hqd,hkd->hqk', q, k,
                       preferred_element_type=jnp.float32)    # (H, tq, tk) f32
        s = jnp.where(keep[None, :, :], s, _NEG_BIG)

        m_prev = m_sc[...]                                    # (H, tq, 1)
        m_new = jnp.maximum(m_prev, jnp.max(s, axis=-1, keepdims=True))
        alpha = jnp.exp(m_prev - m_new)
        p = jnp.exp(s - m_new)
        p = jnp.where(keep[None, :, :], p, 0.0)    # torch re-masks after softmax

        l_sc[...] = alpha * l_sc[...] + jnp.sum(p, axis=-1, keepdims=True)
        acc_sc[...] = alpha * acc_sc[...] + jnp.einsum(
            'hqk,hkd->hqd', p.astype(jnp.bfloat16), v,
            preferred_element_type=jnp.float32)
        m_sc[...] = m_new

    @pl.when(ki == nk - 1)
    def _finalize():
        l_val = l_sc[...]
        # Fully-masked rows have l == 0 -> output 0 (matches torch behavior).
        inv = jnp.where(l_val > 0.0, pl.reciprocal(l_val, approx=True), 0.0)
        ctx = (acc_sc[...] * inv).astype(jnp.bfloat16)        # (H, tq, Dh)
        # Output projection fused with residual: out = hidden + sum_h ctx[h] @ Wo.T[h]
        # (Wo pre-reshaped (H, Dh, D) outside the kernel).
        out = hid_ref[0]                                      # (tq, D) f32
        for hh in range(num_heads):
            out = out + jnp.dot(ctx[hh], wo_ref[hh],
                                preferred_element_type=jnp.float32)
        out_ref[0] = out


def _pick_tile(seq_len, cap):
    """Largest tile <= cap dividing seq_len: full seq if it fits, else a
    multiple of 128 (lane/sublane friendly)."""
    if seq_len <= cap:
        return seq_len
    t = (cap // 128) * 128
    while t >= 128:
        if seq_len % t == 0:
            return t
        t -= 128
    return seq_len  # TODO(synk): handle ragged seq lengths (padding / BoundedSlice)


@functools.partial(jax.jit,
                   static_argnames=("num_heads", "dim_head", "eps",
                                    "q_tile", "kv_tile"))
def self_attention_delta_block(hidden, attention_mask, ln_w, wq, wk, wv, wo, *,
                               num_heads, dim_head, eps=1e-5,
                               q_tile=256, kv_tile=512):
    """hidden (B,S,D) f32; attention_mask (B,S,S) bool; weights torch-Linear layout."""
    B, S, D = hidden.shape
    HD = num_heads * dim_head

    hidden = hidden.astype(jnp.float32)
    keep_b = attention_mask.astype(bool)
    mask_i8 = keep_b.astype(jnp.int8)                         # 4x less HBM than f32
    ln_w2 = ln_w.reshape(1, D).astype(jnp.float32)
    # Pre-transpose / fuse weights outside the kernel (free) -> no in-kernel .T.
    w_qkv_t = jnp.concatenate([wq, wk, wv], axis=0).astype(jnp.bfloat16).T   # (D, 3*HD)
    wo_h = wo.astype(jnp.bfloat16).T.reshape(num_heads, dim_head, D)         # (H, Dh, D)

    tq = _pick_tile(S, q_tile)
    tk = _pick_tile(S, kv_tile)
    nq, nk = S // tq, S // tk

    # Per-(batch, q-tile, kv-tile) "any position attends" indicator, computed
    # once with cheap XLA ops and fed to the attention kernel via scalar
    # prefetch (SMEM) so fully-masked tiles skip all compute.
    block_any = jnp.any(keep_b.reshape(B, nq, tq, nk, tk), axis=(2, 4))
    block_any = block_any.reshape(-1).astype(jnp.int32)       # (B*nq*nk,)

    # TODO(synk): tile the projection weights over their output dim when
    # D * 3*HD (bf16) no longer fits comfortably in VMEM (v7x: 64 MiB physical).
    qkv_kernel = functools.partial(_ln_qkv_kernel, num_heads=num_heads,
                                   dim_head=dim_head, eps=eps)
    q, k, v = pl.pallas_call(
        qkv_kernel,
        out_shape=tuple(jax.ShapeDtypeStruct((B, num_heads, S, dim_head),
                                             jnp.bfloat16) for _ in range(3)),
        grid_spec=pltpu.PrefetchScalarGridSpec(
            num_scalar_prefetch=0,
            grid=(B, nq),
            in_specs=[
                pl.BlockSpec((1, tq, D), lambda b, i: (b, i, 0)),       # hidden
                pl.BlockSpec((1, D), lambda b, i: (0, 0)),              # ln weight
                pl.BlockSpec((D, 3 * HD), lambda b, i: (0, 0)),         # fused Wqkv.T
            ],
            out_specs=[pl.BlockSpec((1, num_heads, tq, dim_head),
                                    lambda b, i: (b, 0, i, 0))
                       for _ in range(3)],
        ),
        compiler_params=pltpu.CompilerParams(
            dimension_semantics=("parallel", "parallel"),
            vmem_limit_bytes=_VMEM_LIMIT),
    )(hidden, ln_w2, w_qkv_t)

    flash_kernel = functools.partial(_flash_attn_kernel, num_heads=num_heads)
    out = pl.pallas_call(
        flash_kernel,
        out_shape=jax.ShapeDtypeStruct((B, S, D), jnp.float32),
        grid_spec=pltpu.PrefetchScalarGridSpec(
            num_scalar_prefetch=1,
            grid=(B, nq, nk),
            in_specs=[
                pl.BlockSpec((1, tq, D), lambda b, i, j, blk: (b, i, 0)),   # residual
                pl.BlockSpec((1, num_heads, tq, dim_head),
                             lambda b, i, j, blk: (b, 0, i, 0)),            # q
                pl.BlockSpec((1, num_heads, tk, dim_head),
                             lambda b, i, j, blk: (b, 0, j, 0)),            # k
                pl.BlockSpec((1, num_heads, tk, dim_head),
                             lambda b, i, j, blk: (b, 0, j, 0)),            # v
                pl.BlockSpec((1, tq, tk), lambda b, i, j, blk: (b, i, j)),  # mask (i8)
                pl.BlockSpec((num_heads, dim_head, D),
                             lambda b, i, j, blk: (0, 0, 0)),               # Wo.T/head
            ],
            out_specs=pl.BlockSpec((1, tq, D), lambda b, i, j, blk: (b, i, 0)),
            scratch_shapes=[
                pltpu.VMEM((num_heads, tq, 1), jnp.float32),            # running max
                pltpu.VMEM((num_heads, tq, 1), jnp.float32),            # running sum
                pltpu.VMEM((num_heads, tq, dim_head), jnp.float32),     # accumulator
            ],
        ),
        compiler_params=pltpu.CompilerParams(
            dimension_semantics=("parallel", "parallel", "arbitrary"),
            vmem_limit_bytes=_VMEM_LIMIT),
    )(block_any, hidden, q, k, v, mask_i8, wo_h)
    return out


def _reference(hidden, attention_mask, ln_w, wq, wk, wv, wo, *, num_heads,
               dim_head, eps=1e-5):
    """Pure-JAX f32 reference mirroring the torch forward (defaults path)."""
    B, S, D = hidden.shape
    var = jnp.mean(hidden * hidden, axis=-1, keepdims=True)
    x = hidden * jax.lax.rsqrt(var + eps) * ln_w[None, None, :]
    q = x @ wq.T
    k = x @ wk.T
    v = x @ wv.T
    q = q.reshape(B, S, num_heads, dim_head).transpose(0, 2, 1, 3)
    k = k.reshape(B, S, num_heads, dim_head).transpose(0, 2, 1, 3)
    v = v.reshape(B, S, num_heads, dim_head).transpose(0, 2, 1, 3)
    score = jnp.einsum('bhqd,bhkd->bhqk', q, k)
    m = attention_mask[:, None, :, :]
    score = jnp.where(m, score, -jnp.inf)
    score = jax.nn.softmax(score, axis=-1)
    score = jnp.where(m, score, 0.0)
    ctx = jnp.einsum('bhqk,bhkd->bhqd', score, v)
    ctx = ctx.transpose(0, 2, 1, 3).reshape(B, S, num_heads * dim_head)
    out = ctx @ wo.T
    return hidden + out


if __name__ == "__main__":
    B, S, D = 2, 8, 32
    H, Dh = 4, 8          # num_heads * dim_head == dim_model
    HD = H * Dh

    key = jax.random.PRNGKey(0)
    k_hid, k_q, k_k, k_v, k_o = jax.random.split(key, 5)

    hidden = jax.random.normal(k_hid, (B, S, D), dtype=jnp.float32)
    causal = jnp.tril(jnp.ones((S, S), dtype=bool))
    attention_mask = jnp.broadcast_to(causal, (B, S, S))

    init_std = 0.02
    ln_w = jnp.ones((D,), dtype=jnp.float32)
    wq = init_std * jax.random.normal(k_q, (HD, D), dtype=jnp.float32)
    wk = init_std * jax.random.normal(k_k, (HD, D), dtype=jnp.float32)
    wv = init_std * jax.random.normal(k_v, (HD, D), dtype=jnp.float32)
    wo = init_std * jax.random.normal(k_o, (D, HD), dtype=jnp.float32)

    out = self_attention_delta_block(hidden, attention_mask, ln_w, wq, wk, wv, wo,
                                     num_heads=H, dim_head=Dh)
    out = jax.block_until_ready(out)

    ref = _reference(hidden, attention_mask, ln_w, wq, wk, wv, wo,
                     num_heads=H, dim_head=Dh)
    # bf16 MXU inputs + approx reciprocal -> looser tolerance than pure f32.
    np.testing.assert_allclose(np.asarray(out), np.asarray(ref),
                               rtol=2e-2, atol=2e-2)

    print("KERNEL_OK")
</pallas_src>

<mosaic_0001>
module attributes {stable_mosaic.version = 11 : i64} {
  func.func @_ln_qkv_kernel(%arg0: i32, %arg1: i32, %arg2: memref<1x8x32xf32, #tpu.memory_space<vmem>>, %arg3: memref<1x32xf32, #tpu.memory_space<vmem>>, %arg4: memref<32x96xbf16, #tpu.memory_space<vmem>>, %arg5: memref<1x4x8x8xbf16, #tpu.memory_space<vmem>>, %arg6: memref<1x4x8x8xbf16, #tpu.memory_space<vmem>>, %arg7: memref<1x4x8x8xbf16, #tpu.memory_space<vmem>>) attributes {dimension_semantics = [#tpu.dimension_semantics<parallel>, #tpu.dimension_semantics<parallel>], iteration_bounds = array<i64: 2, 1>, scalar_prefetch = 0 : i64, scratch_operands = 0 : i64, tpu.core_type = #tpu.core_type<tc>, window_params = [{transform_indices = @transform_0, window_bounds = array<i64: 1, 8, 32>}, {pipeline_mode = #tpu.pipeline_mode<synchronous>, transform_indices = @transform_1, window_bounds = array<i64: 1, 32>}, {pipeline_mode = #tpu.pipeline_mode<synchronous>, transform_indices = @transform_2, window_bounds = array<i64: 32, 96>}, {transform_indices = @transform_3, window_bounds = array<i64: 1, 4, 8, 8>}, {transform_indices = @transform_4, window_bounds = array<i64: 1, 4, 8, 8>}, {transform_indices = @transform_5, window_bounds = array<i64: 1, 4, 8, 8>}]} {
    %c0 = arith.constant 0 : index
    %c0_0 = arith.constant 0 : index
    %c0_1 = arith.constant 0 : index
    %0 = vector.load %arg2[%c0, %c0_0, %c0_1] : memref<1x8x32xf32, #tpu.memory_space<vmem>>, vector<1x8x32xf32>
    %1 = vector.shape_cast %0 : vector<1x8x32xf32> to vector<8x32xf32>
    %2 = arith.mulf %1, %1 : vector<8x32xf32>
    %cst = arith.constant dense<0.000000e+00> : vector<8xf32>
    %3 = vector.multi_reduction <add>, %2, %cst [1] : vector<8x32xf32> to vector<8xf32>
    %4 = vector.shape_cast %3 : vector<8xf32> to vector<8x1xf32>
    %cst_2 = arith.constant 3.200000e+01 : f32
    %5 = vector.broadcast %cst_2 : f32 to vector<8x1xf32>
    %6 = arith.divf %4, %5 : vector<8x1xf32>
    %cst_3 = arith.constant 9.99999974E-6 : f32
    %7 = vector.broadcast %cst_3 : f32 to vector<8x1xf32>
    %8 = arith.addf %6, %7 : vector<8x1xf32>
    %9 = math.rsqrt %8 : vector<8x1xf32>
    %10 = vector.broadcast %9 : vector<8x1xf32> to vector<8x32xf32>
    %11 = arith.mulf %1, %10 : vector<8x32xf32>
    %c0_4 = arith.constant 0 : index
    %c0_5 = arith.constant 0 : index
    %12 = vector.load %arg3[%c0_4, %c0_5] : memref<1x32xf32, #tpu.memory_space<vmem>>, vector<1x32xf32>
    %13 = vector.broadcast %12 : vector<1x32xf32> to vector<8x32xf32>
    %14 = arith.mulf %11, %13 : vector<8x32xf32>
    %15 = arith.truncf %14 : vector<8x32xf32> to vector<8x32xbf16>
    %c0_6 = arith.constant 0 : index
    %c0_7 = arith.constant 0 : index
    %16 = vector.load %arg4[%c0_6, %c0_7] : memref<32x96xbf16, #tpu.memory_space<vmem>>, vector<32x96xbf16>
    %cst_8 = arith.constant dense<0.000000e+00> : vector<8x96xf32>
    %17 = tpu.matmul %15, %16, %cst_8 {dimension_numbers = #tpu.dot_dimension_numbers<[1], [0], [0], [1], [0, 0, 1, 1], [], []>} : vector<8x32xbf16>, vector<32x96xbf16>, vector<8x96xf32> -> vector<8x96xf32>
    %18 = vector.extract_strided_slice %17 {offsets = [0, 0], sizes = [8, 8], strides = [1, 1]} : vector<8x96xf32> to vector<8x8xf32>
    %19 = arith.truncf %18 : vector<8x8xf32> to vector<8x8xbf16>
    %c0_9 = arith.constant 0 : index
    %c0_10 = arith.constant 0 : index
    %c0_11 = arith.constant 0 : index
    %c0_12 = arith.constant 0 : index
    %20 = vector.load %arg5[%c0_9, %c0_10, %c0_11, %c0_12] : memref<1x4x8x8xbf16, #tpu.memory_space<vmem>>, vector<1x1x8x8xbf16>
    %21 = vector.shape_cast %20 : vector<1x1x8x8xbf16> to vector<8x8xbf16>
    %22 = vector.shape_cast %19 : vector<8x8xbf16> to vector<1x1x8x8xbf16>
    tpu.vector_store %arg5[%c0_9, %c0_10, %c0_11, %c0_12], %22 {strides = array<i32>} : memref<1x4x8x8xbf16, #tpu.memory_space<vmem>>, vector<1x1x8x8xbf16>,
    %23 = vector.extract_strided_slice %17 {offsets = [0, 32], sizes = [8, 8], strides = [1, 1]} : vector<8x96xf32> to vector<8x8xf32>
    %24 = arith.truncf %23 : vector<8x8xf32> to vector<8x8xbf16>
    %c0_13 = arith.constant 0 : index
    %c0_14 = arith.constant 0 : index
    %c0_15 = arith.constant 0 : index
    %c0_16 = arith.constant 0 : index
    %25 = vector.load %arg6[%c0_13, %c0_14, %c0_15, %c0_16] : memref<1x4x8x8xbf16, #tpu.memory_space<vmem>>, vector<1x1x8x8xbf16>
    %26 = vector.shape_cast %25 : vector<1x1x8x8xbf16> to vector<8x8xbf16>
    %27 = vector.shape_cast %24 : vector<8x8xbf16> to vector<1x1x8x8xbf16>
    tpu.vector_store %arg6[%c0_13, %c0_14, %c0_15, %c0_16], %27 {strides = array<i32>} : memref<1x4x8x8xbf16, #tpu.memory_space<vmem>>, vector<1x1x8x8xbf16>,
    %28 = vector.extract_strided_slice %17 {offsets = [0, 64], sizes = [8, 8], strides = [1, 1]} : vector<8x96xf32> to vector<8x8xf32>
    %29 = arith.truncf %28 : vector<8x8xf32> to vector<8x8xbf16>
    %c0_17 = arith.constant 0 : index
    %c0_18 = arith.constant 0 : index
    %c0_19 = arith.constant 0 : index
    %c0_20 = arith.constant 0 : index
    %30 = vector.load %arg7[%c0_17, %c0_18, %c0_19, %c0_20] : memref<1x4x8x8xbf16, #tpu.memory_space<vmem>>, vector<1x1x8x8xbf16>
    %31 = vector.shape_cast %30 : vector<1x1x8x8xbf16> to vector<8x8xbf16>
    %32 = vector.shape_cast %29 : vector<8x8xbf16> to vector<1x1x8x8xbf16>
    tpu.vector_store %arg7[%c0_17, %c0_18, %c0_19, %c0_20], %32 {strides = array<i32>} : memref<1x4x8x8xbf16, #tpu.memory_space<vmem>>, vector<1x1x8x8xbf16>,
    %33 = vector.extract_strided_slice %17 {offsets = [0, 8], sizes = [8, 8], strides = [1, 1]} : vector<8x96xf32> to vector<8x8xf32>
    %34 = arith.truncf %33 : vector<8x8xf32> to vector<8x8xbf16>
    %c0_21 = arith.constant 0 : index
    %c1 = arith.constant 1 : index
    %c0_22 = arith.constant 0 : index
    %c0_23 = arith.constant 0 : index
    %35 = vector.load %arg5[%c0_21, %c1, %c0_22, %c0_23] : memref<1x4x8x8xbf16, #tpu.memory_space<vmem>>, vector<1x1x8x8xbf16>
    %36 = vector.shape_cast %35 : vector<1x1x8x8xbf16> to vector<8x8xbf16>
    %37 = vector.shape_cast %34 : vector<8x8xbf16> to vector<1x1x8x8xbf16>
    tpu.vector_store %arg5[%c0_21, %c1, %c0_22, %c0_23], %37 {strides = array<i32>} : memref<1x4x8x8xbf16, #tpu.memory_space<vmem>>, vector<1x1x8x8xbf16>,
    %38 = vector.extract_strided_slice %17 {offsets = [0, 40], sizes = [8, 8], strides = [1, 1]} : vector<8x96xf32> to vector<8x8xf32>
    %39 = arith.truncf %38 : vector<8x8xf32> to vector<8x8xbf16>
    %c0_24 = arith.constant 0 : index
    %c1_25 = arith.constant 1 : index
    %c0_26 = arith.constant 0 : index
    %c0_27 = arith.constant 0 : index
    %40 = vector.load %arg6[%c0_24, %c1_25, %c0_26, %c0_27] : memref<1x4x8x8xbf16, #tpu.memory_space<vmem>>, vector<1x1x8x8xbf16>
    %41 = vector.shape_cast %40 : vector<1x1x8x8xbf16> to vector<8x8xbf16>
    %42 = vector.shape_cast %39 : vector<8x8xbf16> to vector<1x1x8x8xbf16>
    tpu.vector_store %arg6[%c0_24, %c1_25, %c0_26, %c0_27], %42 {strides = array<i32>} : memref<1x4x8x8xbf16, #tpu.memory_space<vmem>>, vector<1x1x8x8xbf16>,
    %43 = vector.extract_strided_slice %17 {offsets = [0, 72], sizes = [8, 8], strides = [1, 1]} : vector<8x96xf32> to vector<8x8xf32>
    %44 = arith.truncf %43 : vector<8x8xf32> to vector<8x8xbf16>
    %c0_28 = arith.constant 0 : index
    %c1_29 = arith.constant 1 : index
    %c0_30 = arith.constant 0 : index
    %c0_31 = arith.constant 0 : index
    %45 = vector.load %arg7[%c0_28, %c1_29, %c0_30, %c0_31] : memref<1x4x8x8xbf16, #tpu.memory_space<vmem>>, vector<1x1x8x8xbf16>
    %46 = vector.shape_cast %45 : vector<1x1x8x8xbf16> to vector<8x8xbf16>
    %47 = vector.shape_cast %44 : vector<8x8xbf16> to vector<1x1x8x8xbf16>
    tpu.vector_store %arg7[%c0_28, %c1_29, %c0_30, %c0_31], %47 {strides = array<i32>} : memref<1x4x8x8xbf16, #tpu.memory_space<vmem>>, vector<1x1x8x8xbf16>,
    %48 = vector.extract_strided_slice %17 {offsets = [0, 16], sizes = [8, 8], strides = [1, 1]} : vector<8x96xf32> to vector<8x8xf32>
    %49 = arith.truncf %48 : vector<8x8xf32> to vector<8x8xbf16>
    %c0_32 = arith.constant 0 : index
    %c2 = arith.constant 2 : index
    %c0_33 = arith.constant 0 : index
    %c0_34 = arith.constant 0 : index
    %50 = vector.load %arg5[%c0_32, %c2, %c0_33, %c0_34] : memref<1x4x8x8xbf16, #tpu.memory_space<vmem>>, vector<1x1x8x8xbf16>
    %51 = vector.shape_cast %50 : vector<1x1x8x8xbf16> to vector<8x8xbf16>
    %52 = vector.shape_cast %49 : vector<8x8xbf16> to vector<1x1x8x8xbf16>
    tpu.vector_store %arg5[%c0_32, %c2, %c0_33, %c0_34], %52 {strides = array<i32>} : memref<1x4x8x8xbf16, #tpu.memory_space<vmem>>, vector<1x1x8x8xbf16>,
    %53 = vector.extract_strided_slice %17 {offsets = [0, 48], sizes = [8, 8], strides = [1, 1]} : vector<8x96xf32> to vector<8x8xf32>
    %54 = arith.truncf %53 : vector<8x8xf32> to vector<8x8xbf16>
    %c0_35 = arith.constant 0 : index
    %c2_36 = arith.constant 2 : index
    %c0_37 = arith.constant 0 : index
    %c0_38 = arith.constant 0 : index
    %55 = vector.load %arg6[%c0_35, %c2_36, %c0_37, %c0_38] : memref<1x4x8x8xbf16, #tpu.memory_space<vmem>>, vector<1x1x8x8xbf16>
    %56 = vector.shape_cast %55 : vector<1x1x8x8xbf16> to vector<8x8xbf16>
    %57 = vector.shape_cast %54 : vector<8x8xbf16> to vector<1x1x8x8xbf16>
    tpu.vector_store %arg6[%c0_35, %c2_36, %c0_37, %c0_38], %57 {strides = array<i32>} : memref<1x4x8x8xbf16, #tpu.memory_space<vmem>>, vector<1x1x8x8xbf16>,
    %58 = vector.extract_strided_slice %17 {offsets = [0, 80], sizes = [8, 8], strides = [1, 1]} : vector<8x96xf32> to vector<8x8xf32>
    %59 = arith.truncf %58 : vector<8x8xf32> to vector<8x8xbf16>
    %c0_39 = arith.constant 0 : index
    %c2_40 = arith.constant 2 : index
    %c0_41 = arith.constant 0 : index
    %c0_42 = arith.constant 0 : index
    %60 = vector.load %arg7[%c0_39, %c2_40, %c0_41, %c0_42] : memref<1x4x8x8xbf16, #tpu.memory_space<vmem>>, vector<1x1x8x8xbf16>
    %61 = vector.shape_cast %60 : vector<1x1x8x8xbf16> to vector<8x8xbf16>
    %62 = vector.shape_cast %59 : vector<8x8xbf16> to vector<1x1x8x8xbf16>
    tpu.vector_store %arg7[%c0_39, %c2_40, %c0_41, %c0_42], %62 {strides = array<i32>} : memref<1x4x8x8xbf16, #tpu.memory_space<vmem>>, vector<1x1x8x8xbf16>,
    %63 = vector.extract_strided_slice %17 {offsets = [0, 24], sizes = [8, 8], strides = [1, 1]} : vector<8x96xf32> to vector<8x8xf32>
    %64 = arith.truncf %63 : vector<8x8xf32> to vector<8x8xbf16>
    %c0_43 = arith.constant 0 : index
    %c3 = arith.constant 3 : index
    %c0_44 = arith.constant 0 : index
    %c0_45 = arith.constant 0 : index
    %65 = vector.load %arg5[%c0_43, %c3, %c0_44, %c0_45] : memref<1x4x8x8xbf16, #tpu.memory_space<vmem>>, vector<1x1x8x8xbf16>
    %66 = vector.shape_cast %65 : vector<1x1x8x8xbf16> to vector<8x8xbf16>
    %67 = vector.shape_cast %64 : vector<8x8xbf16> to vector<1x1x8x8xbf16>
    tpu.vector_store %arg5[%c0_43, %c3, %c0_44, %c0_45], %67 {strides = array<i32>} : memref<1x4x8x8xbf16, #tpu.memory_space<vmem>>, vector<1x1x8x8xbf16>,
    %68 = vector.extract_strided_slice %17 {offsets = [0, 56], sizes = [8, 8], strides = [1, 1]} : vector<8x96xf32> to vector<8x8xf32>
    %69 = arith.truncf %68 : vector<8x8xf32> to vector<8x8xbf16>
    %c0_46 = arith.constant 0 : index
    %c3_47 = arith.constant 3 : index
    %c0_48 = arith.constant 0 : index
    %c0_49 = arith.constant 0 : index
    %70 = vector.load %arg6[%c0_46, %c3_47, %c0_48, %c0_49] : memref<1x4x8x8xbf16, #tpu.memory_space<vmem>>, vector<1x1x8x8xbf16>
    %71 = vector.shape_cast %70 : vector<1x1x8x8xbf16> to vector<8x8xbf16>
    %72 = vector.shape_cast %69 : vector<8x8xbf16> to vector<1x1x8x8xbf16>
    tpu.vector_store %arg6[%c0_46, %c3_47, %c0_48, %c0_49], %72 {strides = array<i32>} : memref<1x4x8x8xbf16, #tpu.memory_space<vmem>>, vector<1x1x8x8xbf16>,
    %73 = vector.extract_strided_slice %17 {offsets = [0, 88], sizes = [8, 8], strides = [1, 1]} : vector<8x96xf32> to vector<8x8xf32>
    %74 = arith.truncf %73 : vector<8x8xf32> to vector<8x8xbf16>
    %c0_50 = arith.constant 0 : index
    %c3_51 = arith.constant 3 : index
    %c0_52 = arith.constant 0 : index
    %c0_53 = arith.constant 0 : index
    %75 = vector.load %arg7[%c0_50, %c3_51, %c0_52, %c0_53] : memref<1x4x8x8xbf16, #tpu.memory_space<vmem>>, vector<1x1x8x8xbf16>
    %76 = vector.shape_cast %75 : vector<1x1x8x8xbf16> to vector<8x8xbf16>
    %77 = vector.shape_cast %74 : vector<8x8xbf16> to vector<1x1x8x8xbf16>
    tpu.vector_store %arg7[%c0_50, %c3_51, %c0_52, %c0_53], %77 {strides = array<i32>} : memref<1x4x8x8xbf16, #tpu.memory_space<vmem>>, vector<1x1x8x8xbf16>,
    return
  }
  func.func @transform_0(%arg0: i32, %arg1: i32) -> (i32, i32, i32) {
    %c0_i32 = arith.constant 0 : i32
    %c0_i32_0 = arith.constant 0 : i32
    return %arg0, %arg1, %c0_i32 : i32, i32, i32
  }
  func.func @transform_1(%arg0: i32, %arg1: i32) -> (i32, i32) {
    %c0_i32 = arith.constant 0 : i32
    %c0_i32_0 = arith.constant 0 : i32
    %c0_i32_1 = arith.constant 0 : i32
    return %c0_i32, %c0_i32_0 : i32, i32
  }
  func.func @transform_2(%arg0: i32, %arg1: i32) -> (i32, i32) {
    %c0_i32 = arith.constant 0 : i32
    %c0_i32_0 = arith.constant 0 : i32
    %c0_i32_1 = arith.constant 0 : i32
    return %c0_i32, %c0_i32_0 : i32, i32
  }
  func.func @transform_3(%arg0: i32, %arg1: i32) -> (i32, i32, i32, i32) {
    %c0_i32 = arith.constant 0 : i32
    %c0_i32_0 = arith.constant 0 : i32
    %c0_i32_1 = arith.constant 0 : i32
    return %arg0, %c0_i32, %arg1, %c0_i32_0 : i32, i32, i32, i32
  }
  func.func @transform_4(%arg0: i32, %arg1: i32) -> (i32, i32, i32, i32) {
    %c0_i32 = arith.constant 0 : i32
    %c0_i32_0 = arith.constant 0 : i32
    %c0_i32_1 = arith.constant 0 : i32
    return %arg0, %c0_i32, %arg1, %c0_i32_0 : i32, i32, i32, i32
  }
  func.func @transform_5(%arg0: i32, %arg1: i32) -> (i32, i32, i32, i32) {
    %c0_i32 = arith.constant 0 : i32
    %c0_i32_0 = arith.constant 0 : i32
    %c0_i32_1 = arith.constant 0 : i32
    return %arg0, %c0_i32, %arg1, %c0_i32_0 : i32, i32, i32, i32
  }
}

module attributes {stable_mosaic.version = 11 : i64} {
  func.func @_flash_attn_kernel(%arg0: i32, %arg1: i32, %arg2: i32, %arg3: memref<2xi32, #tpu.memory_space<smem>>, %arg4: memref<1x8x32xf32, #tpu.memory_space<vmem>>, %arg5: memref<1x4x8x8xbf16, #tpu.memory_space<vmem>>, %arg6: memref<1x4x8x8xbf16, #tpu.memory_space<vmem>>, %arg7: memref<1x4x8x8xbf16, #tpu.memory_space<vmem>>, %arg8: memref<1x8x8xi8, #tpu.memory_space<vmem>>, %arg9: memref<4x8x32xbf16, #tpu.memory_space<vmem>>, %arg10: memref<1x8x32xf32, #tpu.memory_space<vmem>>, %arg11: memref<4x8x1xf32, #tpu.memory_space<vmem>>, %arg12: memref<4x8x1xf32, #tpu.memory_space<vmem>>, %arg13: memref<4x8x8xf32, #tpu.memory_space<vmem>>) attributes {dimension_semantics = [#tpu.dimension_semantics<parallel>, #tpu.dimension_semantics<parallel>, #tpu.dimension_semantics<arbitrary>], iteration_bounds = array<i64: 2, 1, 1>, scalar_prefetch = 1 : i64, scratch_operands = 3 : i64, tpu.core_type = #tpu.core_type<tc>, window_params = [{transform_indices = @transform_0, window_bounds = array<i64: 1, 8, 32>}, {transform_indices = @transform_1, window_bounds = array<i64: 1, 4, 8, 8>}, {transform_indices = @transform_2, window_bounds = array<i64: 1, 4, 8, 8>}, {transform_indices = @transform_3, window_bounds = array<i64: 1, 4, 8, 8>}, {transform_indices = @transform_4, window_bounds = array<i64: 1, 8, 8>}, {pipeline_mode = #tpu.pipeline_mode<synchronous>, transform_indices = @transform_5, window_bounds = array<i64: 4, 8, 32>}, {transform_indices = @transform_6, window_bounds = array<i64: 1, 8, 32>}]} {
    %c0_i32 = arith.constant 0 : i32
    %0 = arith.cmpi eq, %arg2, %c0_i32 : i32
    %1 = arith.extui %0 : i1 to i32
    %c0_i32_0 = arith.constant 0 : i32
    %2 = arith.cmpi ne, %1, %c0_i32_0 : i32
    scf.if %2 {
      %cst = arith.constant -1.000000e+30 : f32
      %15 = vector.broadcast %cst : f32 to vector<4x8x1xf32>
      %c0 = arith.constant 0 : index
      %c0_6 = arith.constant 0 : index
      %c0_7 = arith.constant 0 : index
      %16 = vector.load %arg11[%c0, %c0_6, %c0_7] : memref<4x8x1xf32, #tpu.memory_space<vmem>>, vector<4x8x1xf32>
      tpu.vector_store %arg11[%c0, %c0_6, %c0_7], %15 {strides = array<i32>} : memref<4x8x1xf32, #tpu.memory_space<vmem>>, vector<4x8x1xf32>,
      %cst_8 = arith.constant 0.000000e+00 : f32
      %17 = vector.broadcast %cst_8 : f32 to vector<4x8x1xf32>
      %c0_9 = arith.constant 0 : index
      %c0_10 = arith.constant 0 : index
      %c0_11 = arith.constant 0 : index
      %18 = vector.load %arg12[%c0_9, %c0_10, %c0_11] : memref<4x8x1xf32, #tpu.memory_space<vmem>>, vector<4x8x1xf32>
      tpu.vector_store %arg12[%c0_9, %c0_10, %c0_11], %17 {strides = array<i32>} : memref<4x8x1xf32, #tpu.memory_space<vmem>>, vector<4x8x1xf32>,
      %cst_12 = arith.constant 0.000000e+00 : f32
      %19 = vector.broadcast %cst_12 : f32 to vector<4x8x8xf32>
      %c0_13 = arith.constant 0 : index
      %c0_14 = arith.constant 0 : index
      %c0_15 = arith.constant 0 : index
      %20 = vector.load %arg13[%c0_13, %c0_14, %c0_15] : memref<4x8x8xf32, #tpu.memory_space<vmem>>, vector<4x8x8xf32>
      tpu.vector_store %arg13[%c0_13, %c0_14, %c0_15], %19 {strides = array<i32>} : memref<4x8x8xf32, #tpu.memory_space<vmem>>, vector<4x8x8xf32>,
    } else {
    }
    %c1_i32 = arith.constant 1 : i32
    %3 = arith.muli %arg0, %c1_i32 : i32
    %4 = arith.addi %3, %arg1 : i32
    %c1_i32_1 = arith.constant 1 : i32
    %5 = arith.muli %4, %c1_i32_1 : i32
    %6 = arith.addi %5, %arg2 : i32
    %7 = arith.index_cast %6 : i32 to index
    %8 = memref.load %arg3[%7] : memref<2xi32, #tpu.memory_space<smem>>
    %c0_i32_2 = arith.constant 0 : i32
    %9 = arith.cmpi sgt, %8, %c0_i32_2 : i32
    %10 = arith.extui %9 : i1 to i32
    %c0_i32_3 = arith.constant 0 : i32
    %11 = arith.cmpi ne, %10, %c0_i32_3 : i32
    scf.if %11 {
      %c0 = arith.constant 0 : index
      %c0_6 = arith.constant 0 : index
      %c0_7 = arith.constant 0 : index
      %c0_8 = arith.constant 0 : index
      %15 = vector.load %arg5[%c0, %c0_6, %c0_7, %c0_8] : memref<1x4x8x8xbf16, #tpu.memory_space<vmem>>, vector<1x4x8x8xbf16>
      %16 = vector.shape_cast %15 : vector<1x4x8x8xbf16> to vector<4x8x8xbf16>
      %c0_9 = arith.constant 0 : index
      %c0_10 = arith.constant 0 : index
      %c0_11 = arith.constant 0 : index
      %c0_12 = arith.constant 0 : index
      %17 = vector.load %arg6[%c0_9, %c0_10, %c0_11, %c0_12] : memref<1x4x8x8xbf16, #tpu.memory_space<vmem>>, vector<1x4x8x8xbf16>
      %18 = vector.shape_cast %17 : vector<1x4x8x8xbf16> to vector<4x8x8xbf16>
      %c0_13 = arith.constant 0 : index
      %c0_14 = arith.constant 0 : index
      %c0_15 = arith.constant 0 : index
      %c0_16 = arith.constant 0 : index
      %19 = vector.load %arg7[%c0_13, %c0_14, %c0_15, %c0_16] : memref<1x4x8x8xbf16, #tpu.memory_space<vmem>>, vector<1x4x8x8xbf16>
      %20 = vector.shape_cast %19 : vector<1x4x8x8xbf16> to vector<4x8x8xbf16>
      %c0_17 = arith.constant 0 : index
      %c0_18 = arith.constant 0 : index
      %c0_19 = arith.constant 0 : index
      %21 = vector.load %arg8[%c0_17, %c0_18, %c0_19] : memref<1x8x8xi8, #tpu.memory_space<vmem>>, vector<1x8x8xi8>
      %22 = vector.shape_cast %21 : vector<1x8x8xi8> to vector<8x8xi8>
      %23 = arith.sitofp %22 : vector<8x8xi8> to vector<8x8xf32>
      %cst = arith.constant 0.000000e+00 : f32
      %24 = vector.broadcast %cst : f32 to vector<8x8xf32>
      %25 = arith.cmpf ogt, %23, %24 : vector<8x8xf32>
      "tpu.trace_start"() <{level = 10 : i32, message = "hqd,hkd->hqk"}> : () -> ()
      %cst_20 = arith.constant dense<0.000000e+00> : vector<4x8x8xf32>
      %26 = tpu.matmul %16, %18, %cst_20 {dimension_numbers = #tpu.dot_dimension_numbers<[2], [2], [1], [1], [0, 0, 0, 1, 1, 1], [0], [0]>} : vector<4x8x8xbf16>, vector<4x8x8xbf16>, vector<4x8x8xf32> -> vector<4x8x8xf32>
      "tpu.trace_stop"() : () -> ()
      %27 = vector.shape_cast %25 : vector<8x8xi1> to vector<1x8x8xi1>
      %cst_21 = arith.constant -1.000000e+30 : f32
      %28 = vector.shape_cast %27 : vector<1x8x8xi1> to vector<1x8x8xi1>
      %29 = vector.broadcast %28 : vector<1x8x8xi1> to vector<4x8x8xi1>
      %30 = vector.broadcast %cst_21 : f32 to vector<4x8x8xf32>
      %31 = arith.select %29, %26, %30 : vector<4x8x8xi1>, vector<4x8x8xf32>
      %c0_22 = arith.constant 0 : index
      %c0_23 = arith.constant 0 : index
      %c0_24 = arith.constant 0 : index
      %32 = vector.load %arg11[%c0_22, %c0_23, %c0_24] : memref<4x8x1xf32, #tpu.memory_space<vmem>>, vector<4x8x1xf32>
      %cst_25 = arith.constant dense<0xFF800000> : vector<4x8xf32>
      %33 = vector.multi_reduction <maximumf>, %31, %cst_25 [2] : vector<4x8x8xf32> to vector<4x8xf32>
      %34 = vector.shape_cast %33 : vector<4x8xf32> to vector<4x8x1xf32>
      %35 = arith.maximumf %32, %34 : vector<4x8x1xf32>
      %36 = arith.subf %32, %35 : vector<4x8x1xf32>
      %37 = math.exp %36 : vector<4x8x1xf32>
      %38 = vector.broadcast %35 : vector<4x8x1xf32> to vector<4x8x8xf32>
      %39 = arith.subf %31, %38 : vector<4x8x8xf32>
      %40 = math.exp %39 : vector<4x8x8xf32>
      %41 = vector.shape_cast %25 : vector<8x8xi1> to vector<1x8x8xi1>
      %cst_26 = arith.constant 0.000000e+00 : f32
      %42 = vector.shape_cast %41 : vector<1x8x8xi1> to vector<1x8x8xi1>
      %43 = vector.broadcast %42 : vector<1x8x8xi1> to vector<4x8x8xi1>
      %44 = vector.broadcast %cst_26 : f32 to vector<4x8x8xf32>
      %45 = arith.select %43, %40, %44 : vector<4x8x8xi1>, vector<4x8x8xf32>
      %c0_27 = arith.constant 0 : index
      %c0_28 = arith.constant 0 : index
      %c0_29 = arith.constant 0 : index
      %46 = vector.load %arg12[%c0_27, %c0_28, %c0_29] : memref<4x8x1xf32, #tpu.memory_space<vmem>>, vector<4x8x1xf32>
      %47 = arith.mulf %37, %46 : vector<4x8x1xf32>
      %cst_30 = arith.constant dense<0.000000e+00> : vector<4x8xf32>
      %48 = vector.multi_reduction <add>, %45, %cst_30 [2] : vector<4x8x8xf32> to vector<4x8xf32>
      %49 = vector.shape_cast %48 : vector<4x8xf32> to vector<4x8x1xf32>
      %50 = arith.addf %47, %49 : vector<4x8x1xf32>
      %c0_31 = arith.constant 0 : index
      %c0_32 = arith.constant 0 : index
      %c0_33 = arith.constant 0 : index
      %51 = vector.load %arg12[%c0_31, %c0_32, %c0_33] : memref<4x8x1xf32, #tpu.memory_space<vmem>>, vector<4x8x1xf32>
      tpu.vector_store %arg12[%c0_31, %c0_32, %c0_33], %50 {strides = array<i32>} : memref<4x8x1xf32, #tpu.memory_space<vmem>>, vector<4x8x1xf32>,
      %c0_34 = arith.constant 0 : index
      %c0_35 = arith.constant 0 : index
      %c0_36 = arith.constant 0 : index
      %52 = vector.load %arg13[%c0_34, %c0_35, %c0_36] : memref<4x8x8xf32, #tpu.memory_space<vmem>>, vector<4x8x8xf32>
      %53 = vector.broadcast %37 : vector<4x8x1xf32> to vector<4x8x8xf32>
      %54 = arith.mulf %53, %52 : vector<4x8x8xf32>
      %55 = arith.truncf %45 : vector<4x8x8xf32> to vector<4x8x8xbf16>
      "tpu.trace_start"() <{level = 10 : i32, message = "hqk,hkd->hqd"}> : () -> ()
      %cst_37 = arith.constant dense<0.000000e+00> : vector<4x8x8xf32>
      %56 = tpu.matmul %55, %20, %cst_37 {dimension_numbers = #tpu.dot_dimension_numbers<[2], [1], [1], [2], [0, 0, 0, 1, 1, 2], [0], [0]>} : vector<4x8x8xbf16>, vector<4x8x8xbf16>, vector<4x8x8xf32> -> vector<4x8x8xf32>
      "tpu.trace_stop"() : () -> ()
      %57 = arith.addf %54, %56 : vector<4x8x8xf32>
      %c0_38 = arith.constant 0 : index
      %c0_39 = arith.constant 0 : index
      %c0_40 = arith.constant 0 : index
      %58 = vector.load %arg13[%c0_38, %c0_39, %c0_40] : memref<4x8x8xf32, #tpu.memory_space<vmem>>, vector<4x8x8xf32>
      tpu.vector_store %arg13[%c0_38, %c0_39, %c0_40], %57 {strides = array<i32>} : memref<4x8x8xf32, #tpu.memory_space<vmem>>, vector<4x8x8xf32>,
      %c0_41 = arith.constant 0 : index
      %c0_42 = arith.constant 0 : index
      %c0_43 = arith.constant 0 : index
      %59 = vector.load %arg11[%c0_41, %c0_42, %c0_43] : memref<4x8x1xf32, #tpu.memory_space<vmem>>, vector<4x8x1xf32>
      tpu.vector_store %arg11[%c0_41, %c0_42, %c0_43], %35 {strides = array<i32>} : memref<4x8x1xf32, #tpu.memory_space<vmem>>, vector<4x8x1xf32>,
    } else {
    }
    %c0_i32_4 = arith.constant 0 : i32
    %12 = arith.cmpi eq, %arg2, %c0_i32_4 : i32
    %13 = arith.extui %12 : i1 to i32
    %c0_i32_5 = arith.constant 0 : i32
    %14 = arith.cmpi ne, %13, %c0_i32_5 : i32
    scf.if %14 {
      %c0 = arith.constant 0 : index
      %c0_6 = arith.constant 0 : index
      %c0_7 = arith.constant 0 : index
      %15 = vector.load %arg12[%c0, %c0_6, %c0_7] : memref<4x8x1xf32, #tpu.memory_space<vmem>>, vector<4x8x1xf32>
      %cst = arith.constant 0.000000e+00 : f32
      %16 = vector.broadcast %cst : f32 to vector<4x8x1xf32>
      %17 = arith.cmpf ogt, %15, %16 : vector<4x8x1xf32>
      %18 = tpu.reciprocal %15 {approx = true} : vector<4x8x1xf32> -> vector<4x8x1xf32>
      %cst_8 = arith.constant 0.000000e+00 : f32
      %19 = vector.broadcast %cst_8 : f32 to vector<4x8x1xf32>
      %20 = arith.select %17, %18, %19 : vector<4x8x1xi1>, vector<4x8x1xf32>
      %c0_9 = arith.constant 0 : index
      %c0_10 = arith.constant 0 : index
      %c0_11 = arith.constant 0 : index
      %21 = vector.load %arg13[%c0_9, %c0_10, %c0_11] : memref<4x8x8xf32, #tpu.memory_space<vmem>>, vector<4x8x8xf32>
      %22 = vector.broadcast %20 : vector<4x8x1xf32> to vector<4x8x8xf32>
      %23 = arith.mulf %21, %22 : vector<4x8x8xf32>
      %24 = arith.truncf %23 : vector<4x8x8xf32> to vector<4x8x8xbf16>
      %c0_12 = arith.constant 0 : index
      %c0_13 = arith.constant 0 : index
      %c0_14 = arith.constant 0 : index
      %25 = vector.load %arg4[%c0_12, %c0_13, %c0_14] : memref<1x8x32xf32, #tpu.memory_space<vmem>>, vector<1x8x32xf32>
      %26 = vector.shape_cast %25 : vector<1x8x32xf32> to vector<8x32xf32>
      %27 = vector.extract_strided_slice %24 {offsets = [0, 0, 0], sizes = [1, 8, 8], strides = [1, 1, 1]} : vector<4x8x8xbf16> to vector<1x8x8xbf16>
      %28 = vector.shape_cast %27 : vector<1x8x8xbf16> to vector<8x8xbf16>
      %c0_15 = arith.constant 0 : index
      %c0_16 = arith.constant 0 : index
      %c0_17 = arith.constant 0 : index
      %29 = vector.load %arg9[%c0_15, %c0_16, %c0_17] : memref<4x8x32xbf16, #tpu.memory_space<vmem>>, vector<1x8x32xbf16>
      %30 = vector.shape_cast %29 : vector<1x8x32xbf16> to vector<8x32xbf16>
      %cst_18 = arith.constant dense<0.000000e+00> : vector<8x32xf32>
      %31 = tpu.matmul %28, %30, %cst_18 {dimension_numbers = #tpu.dot_dimension_numbers<[1], [0], [0], [1], [0, 0, 1, 1], [], []>} : vector<8x8xbf16>, vector<8x32xbf16>, vector<8x32xf32> -> vector<8x32xf32>
      %32 = arith.addf %26, %31 : vector<8x32xf32>
      %33 = vector.extract_strided_slice %24 {offsets = [1, 0, 0], sizes = [1, 8, 8], strides = [1, 1, 1]} : vector<4x8x8xbf16> to vector<1x8x8xbf16>
      %34 = vector.shape_cast %33 : vector<1x8x8xbf16> to vector<8x8xbf16>
      %c1 = arith.constant 1 : index
      %c0_19 = arith.constant 0 : index
      %c0_20 = arith.constant 0 : index
      %35 = vector.load %arg9[%c1, %c0_19, %c0_20] : memref<4x8x32xbf16, #tpu.memory_space<vmem>>, vector<1x8x32xbf16>
      %36 = vector.shape_cast %35 : vector<1x8x32xbf16> to vector<8x32xbf16>
      %cst_21 = arith.constant dense<0.000000e+00> : vector<8x32xf32>
      %37 = tpu.matmul %34, %36, %cst_21 {dimension_numbers = #tpu.dot_dimension_numbers<[1], [0], [0], [1], [0, 0, 1, 1], [], []>} : vector<8x8xbf16>, vector<8x32xbf16>, vector<8x32xf32> -> vector<8x32xf32>
      %38 = arith.addf %32, %37 : vector<8x32xf32>
      %39 = vector.extract_strided_slice %24 {offsets = [2, 0, 0], sizes = [1, 8, 8], strides = [1, 1, 1]} : vector<4x8x8xbf16> to vector<1x8x8xbf16>
      %40 = vector.shape_cast %39 : vector<1x8x8xbf16> to vector<8x8xbf16>
      %c2 = arith.constant 2 : index
      %c0_22 = arith.constant 0 : index
      %c0_23 = arith.constant 0 : index
      %41 = vector.load %arg9[%c2, %c0_22, %c0_23] : memref<4x8x32xbf16, #tpu.memory_space<vmem>>, vector<1x8x32xbf16>
      %42 = vector.shape_cast %41 : vector<1x8x32xbf16> to vector<8x32xbf16>
      %cst_24 = arith.constant dense<0.000000e+00> : vector<8x32xf32>
      %43 = tpu.matmul %40, %42, %cst_24 {dimension_numbers = #tpu.dot_dimension_numbers<[1], [0], [0], [1], [0, 0, 1, 1], [], []>} : vector<8x8xbf16>, vector<8x32xbf16>, vector<8x32xf32> -> vector<8x32xf32>
      %44 = arith.addf %38, %43 : vector<8x32xf32>
      %45 = vector.extract_strided_slice %24 {offsets = [3, 0, 0], sizes = [1, 8, 8], strides = [1, 1, 1]} : vector<4x8x8xbf16> to vector<1x8x8xbf16>
      %46 = vector.shape_cast %45 : vector<1x8x8xbf16> to vector<8x8xbf16>
      %c3 = arith.constant 3 : index
      %c0_25 = arith.constant 0 : index
      %c0_26 = arith.constant 0 : index
      %47 = vector.load %arg9[%c3, %c0_25, %c0_26] : memref<4x8x32xbf16, #tpu.memory_space<vmem>>, vector<1x8x32xbf16>
      %48 = vector.shape_cast %47 : vector<1x8x32xbf16> to vector<8x32xbf16>
      %cst_27 = arith.constant dense<0.000000e+00> : vector<8x32xf32>
      %49 = tpu.matmul %46, %48, %cst_27 {dimension_numbers = #tpu.dot_dimension_numbers<[1], [0], [0], [1], [0, 0, 1, 1], [], []>} : vector<8x8xbf16>, vector<8x32xbf16>, vector<8x32xf32> -> vector<8x32xf32>
      %50 = arith.addf %44, %49 : vector<8x32xf32>
      %c0_28 = arith.constant 0 : index
      %c0_29 = arith.constant 0 : index
      %c0_30 = arith.constant 0 : index
      %51 = vector.load %arg10[%c0_28, %c0_29, %c0_30] : memref<1x8x32xf32, #tpu.memory_space<vmem>>, vector<1x8x32xf32>
      %52 = vector.shape_cast %51 : vector<1x8x32xf32> to vector<8x32xf32>
      %53 = vector.shape_cast %50 : vector<8x32xf32> to vector<1x8x32xf32>
      tpu.vector_store %arg10[%c0_28, %c0_29, %c0_30], %53 {strides = array<i32>} : memref<1x8x32xf32, #tpu.memory_space<vmem>>, vector<1x8x32xf32>,
    } else {
    }
    return
  }
  func.func @transform_0(%arg0: i32, %arg1: i32, %arg2: i32, %arg3: memref<2xi32, #tpu.memory_space<smem>>) -> (i32, i32, i32) {
    %c0_i32 = arith.constant 0 : i32
    %c0_i32_0 = arith.constant 0 : i32
    return %arg0, %arg1, %c0_i32 : i32, i32, i32
  }
  func.func @transform_1(%arg0: i32, %arg1: i32, %arg2: i32, %arg3: memref<2xi32, #tpu.memory_space<smem>>) -> (i32, i32, i32, i32) {
    %c0_i32 = arith.constant 0 : i32
    %c0_i32_0 = arith.constant 0 : i32
    %c0_i32_1 = arith.constant 0 : i32
    return %arg0, %c0_i32, %arg1, %c0_i32_0 : i32, i32, i32, i32
  }
  func.func @transform_2(%arg0: i32, %arg1: i32, %arg2: i32, %arg3: memref<2xi32, #tpu.memory_space<smem>>) -> (i32, i32, i32, i32) {
    %c0_i32 = arith.constant 0 : i32
    %c0_i32_0 = arith.constant 0 : i32
    %c0_i32_1 = arith.constant 0 : i32
    return %arg0, %c0_i32, %arg2, %c0_i32_0 : i32, i32, i32, i32
  }
  func.func @transform_3(%arg0: i32, %arg1: i32, %arg2: i32, %arg3: memref<2xi32, #tpu.memory_space<smem>>) -> (i32, i32, i32, i32) {
    %c0_i32 = arith.constant 0 : i32
    %c0_i32_0 = arith.constant 0 : i32
    %c0_i32_1 = arith.constant 0 : i32
    return %arg0, %c0_i32, %arg2, %c0_i32_0 : i32, i32, i32, i32
  }
  func.func @transform_4(%arg0: i32, %arg1: i32, %arg2: i32, %arg3: memref<2xi32, #tpu.memory_space<smem>>) -> (i32, i32, i32) {
    %c0_i32 = arith.constant 0 : i32
    return %arg0, %arg1, %arg2 : i32, i32, i32
  }
  func.func @transform_5(%arg0: i32, %arg1: i32, %arg2: i32, %arg3: memref<2xi32, #tpu.memory_space<smem>>) -> (i32, i32, i32) {
    %c0_i32 = arith.constant 0 : i32
    %c0_i32_0 = arith.constant 0 : i32
    %c0_i32_1 = arith.constant 0 : i32
    %c0_i32_2 = arith.constant 0 : i32
    return %c0_i32, %c0_i32_0, %c0_i32_1 : i32, i32, i32
  }
  func.func @transform_6(%arg0: i32, %arg1: i32, %arg2: i32, %arg3: memref<2xi32, #tpu.memory_space<smem>>) -> (i32, i32, i32) {
    %c0_i32 = arith.constant 0 : i32
    %c0_i32_0 = arith.constant 0 : i32
    return %arg0, %arg1, %c0_i32 : i32, i32, i32
  }
}

</mosaic_0001>

<llo_original>
// kernel: self_attention_delta_block.2
$region0: #{self_attention_delta_block.2}
  #allocation0 [shape = 'u32[]', space=smem, size = 0x4, offset = 0x4, fixed_abs, tag = 'smem constant byte address 0x4 - core index']
  #allocation1 [shape = 'u32[72,128]{1,0:T(1,128)}', space=vmem, size = 0x9000, scoped, tag = 'internal scratch']
  %s0 = inlined_call_operand.vmem [shape: f32[2,8,32], index: 0, kind: input, shape index: {}]
  %s1 = inlined_call_operand.vmem [shape: f32[1,32], index: 1, kind: input, shape index: {}]
  %s2 = inlined_call_operand.vmem [shape: bf16[32,96], index: 2, kind: input, shape index: {}]
  %s3 = inlined_call_operand.vmem [shape: bf16[2,4,8,8], index: 3, kind: output, shape index: {0}]
  %s4 = inlined_call_operand.vmem [shape: bf16[2,4,8,8], index: 4, kind: output, shape index: {1}]
  %s5 = inlined_call_operand.vmem [shape: bf16[2,4,8,8], index: 5, kind: output, shape index: {2}]
  %6 = xla_tuple %s3, %s4, %s5
  %s7 = sld [smem:[#allocation0]]
  $region61: #{self_attention_delta_block.2} parent=0
    _
  %s9 = ssub.s32 1, %s7
  %s10 = scalar_select 0, %s9, %s7
  loop: start=0, step=1, limit=4
  $region2: #{self_attention_delta_block.2} parent=0 // loop_pre_header
    _
  $region3: #{self_attention_delta_block.2} parent=0 // loop_header
    %s12 = sphi 0, %s16
    %p13 = scmp.ge.s32.totalorder %s12, 4
    %s19 = sphi 0, %s31
    %s20 = sphi 0, %s27
    %s21 = sphi 0, %s19
    %s22 = sphi 0, %s20
    %s23 = sphi 0, %s21
    %s24 = sphi 0, %s22
    %s36 = sphi 0, %s38
    %s39 = sphi 0, %s36
    %s40 = sphi 0, %s39
    %s56 = sphi 0, %s40
    %s60 = sphi 0, %s60
    %s62 = sphi 0, %s60
    %s63 = sphi 0, %s62
    %s77 = sphi 0, %s63
    %s81 = sphi 0, %s81
    %s83 = sphi 0, %s81
    %s84 = sphi 0, %s83
    %s98 = sphi 0, %s84
    %s106 = sphi 0, %s108
    %s109 = sphi 0, %s106
    %s110 = sphi 0, %s109
    %s126 = sphi 0, %s110
    %s134 = sphi 0, %s136
    %s137 = sphi 0, %s134
    %s138 = sphi 0, %s137
    %s154 = sphi 0, %s138
    %s162 = sphi 0, %s164
    %s165 = sphi 0, %s162
    %s166 = sphi 0, %s165
    %s182 = sphi 0, %s166
  $region4: #{self_attention_delta_block.2} parent=0 // loop_header_branch
    %15 = sbr.rel (%p13) target = $region8
  $region5: #{self_attention_delta_block.2} parent=0 // loop_body
    %s17 = ssub.s32 %s12, 1
    %s18 = ssub.s32 %s12, 2
    %s25 = sadd.s32 1, %s20
    %p26 = scmp.ge.s32.totalorder %s25, 1
    %s27 = scalar_select %p26, 0, %s25
    %s28 = sadd.s32 1, %s19
    %s29 = scalar_select %p26, %s28, %s19
    %p30 = scmp.ge.s32.totalorder %s29, 2
    %s31 = scalar_select %p30, 0, %s29
    %s32 = ssub.s32 %s19, %s31
    %s33 = ssub.s32 %s20, %s27
    %s34 = sor.u32 %s32, %s33
    %p35 = scmp.eq.s32.totalorder %s34, 0
    %s37 = sadd.s32 %s36, 1
    %s38 = scalar_select %p35, %s36, %s37
    %p41 = pneg %p35
    %p42 = scmp.eq.s32.totalorder %s12, 1
    %p43 = por %p41, %p42
    %p44 = scmp.ne.s32.totalorder %s36, %s39
    %p45 = scmp.eq.s32.totalorder %s12, 0
    %p46 = por %p44, %p45
    %p47 = scmp.ne.s32.totalorder %s36, %s39
    %p48 = scmp.eq.s32.totalorder %s17, 1
    %p49 = por %p47, %p48
    %p50 = scmp.ne.s32.totalorder %s39, %s40
    %p51 = scmp.eq.s32.totalorder %s17, 0
    %p52 = por %p50, %p51
    %p53 = scmp.ne.s32.totalorder %s39, %s40
    %p54 = scmp.eq.s32.totalorder %s18, 1
    %p55 = por %p53, %p54
    %p57 = scmp.ne.s32.totalorder %s40, %s56
    %p58 = scmp.eq.s32.totalorder %s18, 0
    %p59 = por %p57, %p58
    %s61 = sadd.s32 %s60, 1
    %p64 = scmp.eq.s32.totalorder %s12, 1
    %p65 = scmp.ne.s32.totalorder %s60, %s62
    %p66 = scmp.eq.s32.totalorder %s12, 0
    %p67 = por %p65, %p66
    %p68 = scmp.ne.s32.totalorder %s60, %s62
    %p69 = scmp.eq.s32.totalorder %s17, 1
    %p70 = por %p68, %p69
    %p71 = scmp.ne.s32.totalorder %s62, %s63
    %p72 = scmp.eq.s32.totalorder %s17, 0
    %p73 = por %p71, %p72
    %p74 = scmp.ne.s32.totalorder %s62, %s63
    %p75 = scmp.eq.s32.totalorder %s18, 1
    %p76 = por %p74, %p75
    %p78 = scmp.ne.s32.totalorder %s63, %s77
    %p79 = scmp.eq.s32.totalorder %s18, 0
    %p80 = por %p78, %p79
    %s82 = sadd.s32 %s81, 1
    %p85 = scmp.eq.s32.totalorder %s12, 1
    %p86 = scmp.ne.s32.totalorder %s81, %s83
    %p87 = scmp.eq.s32.totalorder %s12, 0
    %p88 = por %p86, %p87
    %p89 = scmp.ne.s32.totalorder %s81, %s83
    %p90 = scmp.eq.s32.totalorder %s17, 1
    %p91 = por %p89, %p90
    %p92 = scmp.ne.s32.totalorder %s83, %s84
    %p93 = scmp.eq.s32.totalorder %s17, 0
    %p94 = por %p92, %p93
    %p95 = scmp.ne.s32.totalorder %s83, %s84
    %p96 = scmp.eq.s32.totalorder %s18, 1
    %p97 = por %p95, %p96
    %p99 = scmp.ne.s32.totalorder %s84, %s98
    %p100 = scmp.eq.s32.totalorder %s18, 0
    %p101 = por %p99, %p100
    %s102 = ssub.s32 %s19, %s31
    %s103 = ssub.s32 %s20, %s27
    %s104 = sor.u32 %s102, %s103
    %p105 = scmp.eq.s32.totalorder %s104, 0
    %s107 = sadd.s32 %s106, 1
    %s108 = scalar_select %p105, %s106, %s107
    %p111 = pneg %p105
    %p112 = scmp.eq.s32.totalorder %s12, 1
    %p113 = por %p111, %p112
    %p114 = scmp.ne.s32.totalorder %s106, %s109
    %p115 = scmp.eq.s32.totalorder %s12, 0
    %p116 = por %p114, %p115
    %p117 = scmp.ne.s32.totalorder %s106, %s109
    %p118 = scmp.eq.s32.totalorder %s17, 1
    %p119 = por %p117, %p118
    %p120 = scmp.ne.s32.totalorder %s109, %s110
    %p121 = scmp.eq.s32.totalorder %s17, 0
    %p122 = por %p120, %p121
    %p123 = scmp.ne.s32.totalorder %s109, %s110
    %p124 = scmp.eq.s32.totalorder %s18, 1
    %p125 = por %p123, %p124
    %p127 = scmp.ne.s32.totalorder %s110, %s126
    %p128 = scmp.eq.s32.totalorder %s18, 0
    %p129 = por %p127, %p128
    %s130 = ssub.s32 %s19, %s31
    %s131 = ssub.s32 %s20, %s27
    %s132 = sor.u32 %s130, %s131
    %p133 = scmp.eq.s32.totalorder %s132, 0
    %s135 = sadd.s32 %s134, 1
    %s136 = scalar_select %p133, %s134, %s135
    %p139 = pneg %p133
    %p140 = scmp.eq.s32.totalorder %s12, 1
    %p141 = por %p139, %p140
    %p142 = scmp.ne.s32.totalorder %s134, %s137
    %p143 = scmp.eq.s32.totalorder %s12, 0
    %p144 = por %p142, %p143
    %p145 = scmp.ne.s32.totalorder %s134, %s137
    %p146 = scmp.eq.s32.totalorder %s17, 1
    %p147 = por %p145, %p146
    %p148 = scmp.ne.s32.totalorder %s137, %s138
    %p149 = scmp.eq.s32.totalorder %s17, 0
    %p150 = por %p148, %p149
    %p151 = scmp.ne.s32.totalorder %s137, %s138
    %p152 = scmp.eq.s32.totalorder %s18, 1
    %p153 = por %p151, %p152
    %p155 = scmp.ne.s32.totalorder %s138, %s154
    %p156 = scmp.eq.s32.totalorder %s18, 0
    %p157 = por %p155, %p156
    %s158 = ssub.s32 %s19, %s31
    %s159 = ssub.s32 %s20, %s27
    %s160 = sor.u32 %s158, %s159
    %p161 = scmp.eq.s32.totalorder %s160, 0
    %s163 = sadd.s32 %s162, 1
    %s164 = scalar_select %p161, %s162, %s163
    %p167 = pneg %p161
    %p168 = scmp.eq.s32.totalorder %s12, 1
    %p169 = por %p167, %p168
    %p170 = scmp.ne.s32.totalorder %s162, %s165
    %p171 = scmp.eq.s32.totalorder %s12, 0
    %p172 = por %p170, %p171
    %p173 = scmp.ne.s32.totalorder %s162, %s165
    %p174 = scmp.eq.s32.totalorder %s17, 1
    %p175 = por %p173, %p174
    %p176 = scmp.ne.s32.totalorder %s165, %s166
    %p177 = scmp.eq.s32.totalorder %s17, 0
    %p178 = por %p176, %p177
    %p179 = scmp.ne.s32.totalorder %s165, %s166
    %p180 = scmp.eq.s32.totalorder %s18, 1
    %p181 = por %p179, %p180
    %p183 = scmp.ne.s32.totalorder %s166, %s182
    %p184 = scmp.eq.s32.totalorder %s18, 0
    %p185 = por %p183, %p184
    %p186 = scmp.le.s32.totalorder 1, %s12
    %p187 = scmp.lt.s32.totalorder %s12, 3
    %p188 = pnand %p186, %p187
    %p189 = pneg %p188
    // Predicated region
    $region9: #{self_attention_delta_block.2} parent=5 // pred_check
      _
    $region10: #{self_attention_delta_block.2} parent=5 // pred_check_branch
      %191 = sbr.rel (%p188) target = $region12
    $region11: #{self_attention_delta_block.2} parent=5 // pred_region
      %s192 = ssub.s32 %s12, 1
      // Predicated region
      $region13: #{self_attention_delta_block.2} parent=11 // pred_check
        %p193 = pneg %p73
      $region14: #{self_attention_delta_block.2} parent=11 // pred_check_branch
        %195 = sbr.rel (%p193) target = $region16
      $region15: #{self_attention_delta_block.2} parent=11 // pred_region
        _
      $region16: #{self_attention_delta_block.2} parent=11 // pred_fallthru
        _
      // Predicated region
      $region17: #{self_attention_delta_block.2} parent=11 // pred_check
        %p196 = pneg %p94
      $region18: #{self_attention_delta_block.2} parent=11 // pred_check_branch
        %198 = sbr.rel (%p196) target = $region20
      $region19: #{self_attention_delta_block.2} parent=11 // pred_region
        _
      $region20: #{self_attention_delta_block.2} parent=11 // pred_fallthru
        _
    $region12: #{self_attention_delta_block.2} parent=5 // pred_fallthru
      _
    %p199 = scmp.lt.s32.totalorder %s12, 2
    // Predicated region
    $region21: #{self_attention_delta_block.2} parent=5 // pred_check
      %p200 = pneg %p199
    $region22: #{self_attention_delta_block.2} parent=5 // pred_check_branch
      %202 = sbr.rel (%p200) target = $region24
    $region23: #{self_attention_delta_block.2} parent=5 // pred_region
      // Predicated region
      $region25: #{self_attention_delta_block.2} parent=23 // pred_check
        %p203 = pneg %p46
      $region26: #{self_attention_delta_block.2} parent=23 // pred_check_branch
        %205 = sbr.rel (%p203) target = $region28
      $region27: #{self_attention_delta_block.2} parent=23 // pred_region
        %p206 = scmp.lt.s32.totalorder %s19, 1
        %s207 = scalar_select %p206, %s19, 1
        %p208 = scmp.lt.s32.totalorder %s20, 0
        %s209 = scalar_select %p208, %s20, 0
        %s210 = sadd.s32 %s209, %s207
        %s211 = smul.addr %s210, 8
        %s212 = scalar_lea.vmem %s0, %s211
      $region28: #{self_attention_delta_block.2} parent=23 // pred_fallthru
        _
    $region24: #{self_attention_delta_block.2} parent=5 // pred_fallthru
      _
    %p213 = scmp.le.s32.totalorder 1, %s12
    %p214 = scmp.lt.s32.totalorder %s12, 3
    %p215 = pnand %p213, %p214
    %p216 = pneg %p215
    // Predicated region
    $region29: #{self_attention_delta_block.2} parent=5 // pred_check
      _
    $region30: #{self_attention_delta_block.2} parent=5 // pred_check_branch
      %218 = sbr.rel (%p215) target = $region32
    $region31: #{self_attention_delta_block.2} parent=5 // pred_region
      %s219 = ssub.s32 %s12, 1
      %p220 = scmp.lt.s32.totalorder %s21, 1
      %s221 = scalar_select %p220, %s21, 1
      %p222 = scmp.lt.s32.totalorder %s22, 0
      %s223 = scalar_select %p222, %s22, 0
      %s224 = sadd.s32 %s223, %s221
      %s225 = smul.addr %s224, 8
      %s226 = scalar_lea.vmem %s0, %s225
      %p227 = pneg %p52
      %p228 = pneg %p49
      %p229 = pneg %p73
      %p230 = pneg %p70
      %p231 = pneg %p94
      %p232 = pneg %p91
      %p233 = pneg %p122
      %p234 = pneg %p119
      %p235 = scmp.lt.s32.totalorder %s21, 1
      %s236 = scalar_select %p235, %s21, 1
      %p237 = scmp.lt.s32.totalorder %s22, 0
      %s238 = scalar_select %p237, %s22, 0
      %s239 = smul.addr %s236, 4
      %s240 = sadd.s32 %s238, %s239
      %s241 = smul.addr %s240, 4
      %s242 = scalar_lea.vmem %s3, %s241
      %p243 = pneg %p150
      %p244 = pneg %p147
      %p245 = scmp.lt.s32.totalorder %s21, 1
      %s246 = scalar_select %p245, %s21, 1
      %p247 = scmp.lt.s32.totalorder %s22, 0
      %s248 = scalar_select %p247, %s22, 0
      %s249 = smul.addr %s246, 4
      %s250 = sadd.s32 %s248, %s249
      %s251 = smul.addr %s250, 4
      %s252 = scalar_lea.vmem %s4, %s251
      %p253 = pneg %p178
      %p254 = pneg %p175
      %p255 = scmp.lt.s32.totalorder %s21, 1
      %s256 = scalar_select %p255, %s21, 1
      %p257 = scmp.lt.s32.totalorder %s22, 0
      %s258 = scalar_select %p257, %s22, 0
      %s259 = smul.addr %s256, 4
      %s260 = sadd.s32 %s258, %s259
      %s261 = smul.addr %s260, 4
      %s262 = scalar_lea.vmem %s5, %s261
      %p263 = scmp.lt.s32.totalorder %s21, 1
      %s264 = scalar_select %p263, %s21, 1
      %p265 = scmp.lt.s32.totalorder %s22, 0
      %s266 = scalar_select %p265, %s22, 0
      %s267 = sadd.s32 %s266, %s264
      %s268 = smul.addr %s267, 8
      %s269 = scalar_lea.vmem %s0, %s268
      %p270 = scmp.lt.s32.totalorder %s21, 1
      %s271 = scalar_select %p270, %s21, 1
      %p272 = scmp.lt.s32.totalorder %s22, 0
      %s273 = scalar_select %p272, %s22, 0
      %s274 = smul.addr %s271, 4
      %s275 = sadd.s32 %s273, %s274
      %s276 = smul.addr %s275, 4
      %s277 = scalar_lea.vmem %s3, %s276
      %p278 = scmp.lt.s32.totalorder %s21, 1
      %s279 = scalar_select %p278, %s21, 1
      %p280 = scmp.lt.s32.totalorder %s22, 0
      %s281 = scalar_select %p280, %s22, 0
      %s282 = smul.addr %s279, 4
      %s283 = sadd.s32 %s281, %s282
      %s284 = smul.addr %s283, 4
      %s285 = scalar_lea.vmem %s4, %s284
      %p286 = scmp.lt.s32.totalorder %s21, 1
      %s287 = scalar_select %p286, %s21, 1
      %p288 = scmp.lt.s32.totalorder %s22, 0
      %s289 = scalar_select %p288, %s22, 0
      %s290 = smul.addr %s287, 4
      %s291 = sadd.s32 %s289, %s290
      %s292 = smul.addr %s291, 4
      %s293 = scalar_lea.vmem %s5, %s292
      %v295 = vld [vmem:[%s269] sm:$0xff]
      %v296 = vmul.f32 %v295, %v295
      %vm297 = vcmask 261120
      %v298 = vsel %vm297, %v296, 0.0
      %299 = vadd.xlane.f32.xlu0 %v298
      %v300 = vpop.xlane.xlu0 %299
      %v301 = vrcp.pop 32.0
      %v302 = vmul.f32 32.0, %v301
      %v303 = vsub.f32 1.0, %v302
      %v304 = vmul.f32 %v301, %v303
      %v305 = vadd.f32 %v301, %v304
      %vm306 = vweird.f32 %v301
      %v307 = vsel %vm306, %v301, %v305
      %v308 = vmul.f32 %v300, %v307
      %v309 = vadd.f32 %v308, 1e-05
      %v310 = vrsqrt.pop %v309
      %v311 = vmul.f32 %v310, %v309
      %v312 = vmul.f32 %v311, %v310
      %v313 = vmul.f32 0.5, %v312
      %v314 = vsub.f32 1.5, %v313
      %v315 = vmul.f32 %v310, %v314
      %vm316 = vweird.f32 %v309
      %vm317 = vweird.f32 %v310
      %vm318 = vmor %vm316, %vm317
      %v319 = vsel %vm318, %v310, %v315
      %v320 = vmul.f32 %v295, %v319
      %v321 = vld [vmem:[%s1] sm:$0x1]
      %v323 = vperm.slane %v321, 0
      %v325 = vmul.f32 %v320, %v323
      %v326 = vpack.c.bf16 %v325, %v325
      %v327 = vld [vmem:[%s2] sm:$0xf]
      %v328 = vld [vmem:[%s2 + $0x4] sm:$0xf]
      %v329 = vld [vmem:[%s2 + $0x8] sm:$0xf]
      %v330 = vld [vmem:[%s2 + $0xc] sm:$0xf]
      %v335 = vunpack.c.l.b16 %v327
      %v336 = vunpack.c.l.b16 %v328
      %v337 = vunpack.c.l.b16 %v329
      %v338 = vunpack.c.l.b16 %v330
      %v339 = vpack.c.b16 %v336, %v335
      %v340 = vpack.c.b16 %v338, %v337
      %v344 = vsel %vm297, %v326, 0
      %346 = vmatpush.bf16.msra.mxu0 0
      %347 = vmatpush.bf16.msra.mxu0 0
      %348 = vmatpush.bf16.msra.mxu0 0
      %349 = vmatpush.bf16.msra.mxu0 0
      %350 = vmatpush.bf16.msra.mxu0 0
      %351 = vmatpush.bf16.msra.mxu0 0
      %352 = vmatpush.bf16.msra.mxu0 %v340
      %353 = vmatpush.bf16.msra.mxu0 %v339
      %354 = vmatmul.bf16.gmra.mxu0 %v344
      %v355 = vpop.f32.mrf.mxu0
      %v356 = vadd.f32 0.0, %v355
      %v357 = vpop.f32.mrf.mxu0
      %358 = vdwg.mxu0
      %v359 = vpack.c.bf16 %v356, %v356
      %vm360 = vcmask 60416
      %361 = vst.msk [vmem:[%s277] sm:$0xf] %vm360, %v359
      %363 = vrot.lane.b32.xlu0 %v359, 96
      %v364 = vpop.permute.xlu0 %363
      %366 = vst.msk [vmem:[%s285] sm:$0xf] %vm360, %v364
      %367 = vrot.lane.b32.xlu0 %v359, 64
      %v368 = vpop.permute.xlu0 %367
      %370 = vst.msk [vmem:[%s293] sm:$0xf] %vm360, %v368
      %371 = vrot.lane.b32.xlu0 %v359, 120
      %v372 = vpop.permute.xlu0 %371
      %s374 = scalar_lea.vmem %s277, 4
      %375 = vst.msk [vmem:[%s374] sm:$0xf] %vm360, %v372
      %376 = vrot.lane.b32.xlu0 %v359, 88
      %v377 = vpop.permute.xlu0 %376
      %s379 = scalar_lea.vmem %s285, 4
      %380 = vst.msk [vmem:[%s379] sm:$0xf] %vm360, %v377
      %381 = vrot.lane.b32.xlu0 %v359, 56
      %v382 = vpop.permute.xlu0 %381
      %s384 = scalar_lea.vmem %s293, 4
      %385 = vst.msk [vmem:[%s384] sm:$0xf] %vm360, %v382
      %386 = vrot.lane.b32.xlu0 %v359, 112
      %v387 = vpop.permute.xlu0 %386
      %s389 = scalar_lea.vmem %s277, 8
      %390 = vst.msk [vmem:[%s389] sm:$0xf] %vm360, %v387
      %391 = vrot.lane.b32.xlu0 %v359, 80
      %v392 = vpop.permute.xlu0 %391
      %s394 = scalar_lea.vmem %s285, 8
      %395 = vst.msk [vmem:[%s394] sm:$0xf] %vm360, %v392
      %396 = vrot.lane.b32.xlu0 %v359, 48
      %v397 = vpop.permute.xlu0 %396
      %s399 = scalar_lea.vmem %s293, 8
      %400 = vst.msk [vmem:[%s399] sm:$0xf] %vm360, %v397
      %401 = vrot.lane.b32.xlu0 %v359, 104
      %v402 = vpop.permute.xlu0 %401
      %s404 = scalar_lea.vmem %s277, 12
      %405 = vst.msk [vmem:[%s404] sm:$0xf] %vm360, %v402
      %406 = vrot.lane.b32.xlu0 %v359, 72
      %v407 = vpop.permute.xlu0 %406
      %s409 = scalar_lea.vmem %s285, 12
      %410 = vst.msk [vmem:[%s409] sm:$0xf] %vm360, %v407
      %411 = vrot.lane.b32.xlu0 %v359, 40
      %v412 = vpop.permute.xlu0 %411
      %s414 = scalar_lea.vmem %s293, 12
      %415 = vst.msk [vmem:[%s414] sm:$0xf] %vm360, %v412
      %p416 = scmp.lt.s32.totalorder %s21, 1
      %s417 = scalar_select %p416, %s21, 1
      %p418 = scmp.lt.s32.totalorder %s22, 0
      %s419 = scalar_select %p418, %s22, 0
      %s420 = smul.addr %s417, 4
      %s421 = sadd.s32 %s419, %s420
      %s422 = smul.addr %s421, 4
      %s423 = scalar_lea.vmem %s3, %s422
      %p424 = scmp.lt.s32.totalorder %s21, 1
      %s425 = scalar_select %p424, %s21, 1
      %p426 = scmp.lt.s32.totalorder %s22, 0
      %s427 = scalar_select %p426, %s22, 0
      %s428 = smul.addr %s425, 4
      %s429 = sadd.s32 %s427, %s428
      %s430 = smul.addr %s429, 4
      %s431 = scalar_lea.vmem %s4, %s430
      %p432 = scmp.lt.s32.totalorder %s21, 1
      %s433 = scalar_select %p432, %s21, 1
      %p434 = scmp.lt.s32.totalorder %s22, 0
      %s435 = scalar_select %p434, %s22, 0
      %s436 = smul.addr %s433, 4
      %s437 = sadd.s32 %s435, %s436
      %s438 = smul.addr %s437, 4
      %s439 = scalar_lea.vmem %s5, %s438
      // Predicated region
      $region33: #{self_attention_delta_block.2} parent=31 // pred_check
        %p440 = pneg %p119
      $region34: #{self_attention_delta_block.2} parent=31 // pred_check_branch
        %442 = sbr.rel (%p440) target = $region36
      $region35: #{self_attention_delta_block.2} parent=31 // pred_region
        _
      $region36: #{self_attention_delta_block.2} parent=31 // pred_fallthru
        _
      // Predicated region
      $region37: #{self_attention_delta_block.2} parent=31 // pred_check
        %p443 = pneg %p147
      $region38: #{self_attention_delta_block.2} parent=31 // pred_check_branch
        %445 = sbr.rel (%p443) target = $region40
      $region39: #{self_attention_delta_block.2} parent=31 // pred_region
        _
      $region40: #{self_attention_delta_block.2} parent=31 // pred_fallthru
        _
      // Predicated region
      $region41: #{self_attention_delta_block.2} parent=31 // pred_check
        %p446 = pneg %p175
      $region42: #{self_attention_delta_block.2} parent=31 // pred_check_branch
        %448 = sbr.rel (%p446) target = $region44
      $region43: #{self_attention_delta_block.2} parent=31 // pred_region
        _
      $region44: #{self_attention_delta_block.2} parent=31 // pred_fallthru
        _
    $region32: #{self_attention_delta_block.2} parent=5 // pred_fallthru
      _
    %p449 = scmp.le.s32.totalorder 2, %s12
    // Predicated region
    $region45: #{self_attention_delta_block.2} parent=5 // pred_check
      %p450 = pneg %p449
    $region46: #{self_attention_delta_block.2} parent=5 // pred_check_branch
      %452 = sbr.rel (%p450) target = $region48
    $region47: #{self_attention_delta_block.2} parent=5 // pred_region
      %s453 = ssub.s32 %s12, 2
      // Predicated region
      $region49: #{self_attention_delta_block.2} parent=47 // pred_check
        %p454 = pneg %p125
      $region50: #{self_attention_delta_block.2} parent=47 // pred_check_branch
        %456 = sbr.rel (%p454) target = $region52
      $region51: #{self_attention_delta_block.2} parent=47 // pred_region
        %p457 = scmp.lt.s32.totalorder %s23, 1
        %s458 = scalar_select %p457, %s23, 1
        %p459 = scmp.lt.s32.totalorder %s24, 0
        %s460 = scalar_select %p459, %s24, 0
        %s461 = smul.addr %s458, 4
        %s462 = sadd.s32 %s460, %s461
        %s463 = smul.addr %s462, 4
        %s464 = scalar_lea.vmem %s3, %s463
      $region52: #{self_attention_delta_block.2} parent=47 // pred_fallthru
        _
      // Predicated region
      $region53: #{self_attention_delta_block.2} parent=47 // pred_check
        %p465 = pneg %p153
      $region54: #{self_attention_delta_block.2} parent=47 // pred_check_branch
        %467 = sbr.rel (%p465) target = $region56
      $region55: #{self_attention_delta_block.2} parent=47 // pred_region
        %p468 = scmp.lt.s32.totalorder %s23, 1
        %s469 = scalar_select %p468, %s23, 1
        %p470 = scmp.lt.s32.totalorder %s24, 0
        %s471 = scalar_select %p470, %s24, 0
        %s472 = smul.addr %s469, 4
        %s473 = sadd.s32 %s471, %s472
        %s474 = smul.addr %s473, 4
        %s475 = scalar_lea.vmem %s4, %s474
      $region56: #{self_attention_delta_block.2} parent=47 // pred_fallthru
        _
      // Predicated region
      $region57: #{self_attention_delta_block.2} parent=47 // pred_check
        %p476 = pneg %p181
      $region58: #{self_attention_delta_block.2} parent=47 // pred_check_branch
        %478 = sbr.rel (%p476) target = $region60
      $region59: #{self_attention_delta_block.2} parent=47 // pred_region
        %p479 = scmp.lt.s32.totalorder %s23, 1
        %s480 = scalar_select %p479, %s23, 1
        %p481 = scmp.lt.s32.totalorder %s24, 0
        %s482 = scalar_select %p481, %s24, 0
        %s483 = smul.addr %s480, 4
        %s484 = sadd.s32 %s482, %s483
        %s485 = smul.addr %s484, 4
        %s486 = scalar_lea.vmem %s5, %s485
      $region60: #{self_attention_delta_block.2} parent=47 // pred_fallthru
        _
    $region48: #{self_attention_delta_block.2} parent=5 // pred_fallthru
      _
  $region6: #{self_attention_delta_block.2} parent=0 // loop_footer
    %s16 = sadd.s32 1, %s12
  $region7: #{self_attention_delta_block.2} parent=0 // loop_footer_branch
    %11 = sbr.rel target = $region3
  $region8: #{self_attention_delta_block.2} parent=0 // loop_exit
    _

// kernel: self_attention_delta_block.3
$region0: #{self_attention_delta_block.3}
  #allocation0 [shape = 'u32[]', space=smem, size = 0x4, offset = 0x4, fixed_abs, tag = 'smem constant byte address 0x4 - core index']
  #allocation1 [shape = 'u32[72,128]{1,0:T(1,128)}', space=vmem, size = 0x9000, scoped, tag = 'internal scratch']
  #allocation2 [shape = 'f32[4,8,1]{2,1,0:T(8,128)}', space=vmem, size = 0x4000, scoped, tag = 'scratch operand']
  #allocation3 [shape = 'f32[4,8,1]{2,1,0:T(8,128)}', space=vmem, size = 0x4000, scoped, tag = 'scratch operand']
  #allocation4 [shape = 'f32[4,8,8]{2,1,0:T(8,128)}', space=vmem, size = 0x4000, scoped, tag = 'scratch operand']
  #allocation5 [shape = 's32[1]{0}', space=sflag, size = 0x4, scoped, tag = 'scoped memory for self_attention_delta_block.3']
  #allocation6 [shape = 'u8[512]{0}', space=smem, size = 0x200, scoped, tag = 'prefetched SMEM operand 0']
  %s0 = inlined_call_operand.vmem [shape: s32[2], index: 0, kind: input, shape index: {}]
  %s1 = inlined_call_operand.vmem [shape: f32[2,8,32], index: 1, kind: input, shape index: {}]
  %s2 = inlined_call_operand.vmem [shape: bf16[2,4,8,8], index: 2, kind: input, shape index: {}]
  %s3 = inlined_call_operand.vmem [shape: bf16[2,4,8,8], index: 3, kind: input, shape index: {}]
  %s4 = inlined_call_operand.vmem [shape: bf16[2,4,8,8], index: 4, kind: input, shape index: {}]
  %s5 = inlined_call_operand.vmem [shape: s8[2,8,8], index: 5, kind: input, shape index: {}]
  %s6 = inlined_call_operand.vmem [shape: bf16[4,8,32], index: 6, kind: input, shape index: {}]
  %s7 = inlined_call_operand.hbm [shape: f32[2,8,32], index: 7, kind: output, shape index: {}]
  %s8 = sld [smem:[#allocation0]]
  $region69: #{self_attention_delta_block.3} parent=0
    _
  %s10 = ssub.s32 1, %s8
  %s11 = scalar_select 0, %s10, %s8
  %s13 = sshll.u32 %s0, 4
  %s14 = int_to_ptr.vmem [resolvable:$true] %s13
  %16 = dma.vmem_to_smem %s14, 16, [#allocation6], [#allocation5]
  %18 = dma.done [#allocation5], 16
  %19 = sfence
  $region1: #{self_attention_delta_block.3} parent=0
    #allocation7 [shape = 'u8[8192]{0}', space=vmem, size = 0x2000, scoped, tag = 'output window, operand 0']
    #allocation8 [shape = 's32[2]{0}', space=sflag, size = 0x8, scoped, tag = 'scoped memory for self_attention_delta_block.3']
    %20 = vsyncpa [#allocation8], 0
    %s21 = scalar_lea.sflag [#allocation8], 1
    %22 = vsyncpa %s21, 0
    loop: start=0, step=1, limit=4
    $region2: #{self_attention_delta_block.3} parent=1 // loop_pre_header
      _
    $region3: #{self_attention_delta_block.3} parent=1 // loop_header
      %s24 = sphi 0, %s28
      %p25 = scmp.ge.s32.totalorder %s24, 4
      %s31 = sphi 0, %s50
      %s32 = sphi 0, %s46
      %s33 = sphi 0, %s42
      %s34 = sphi 0, %s31
      %s35 = sphi 0, %s32
      %s36 = sphi 0, %s33
      %s37 = sphi 0, %s34
      %s38 = sphi 0, %s35
      %s39 = sphi 0, %s36
      %s55 = sphi 0, %s57
      %s58 = sphi 0, %s55
      %s59 = sphi 0, %s58
      %s75 = sphi 0, %s59
      %s83 = sphi 0, %s85
      %s86 = sphi 0, %s83
      %s87 = sphi 0, %s86
      %s103 = sphi 0, %s87
      %s111 = sphi 0, %s113
      %s114 = sphi 0, %s111
      %s115 = sphi 0, %s114
      %s131 = sphi 0, %s115
      %s139 = sphi 0, %s141
      %s142 = sphi 0, %s139
      %s143 = sphi 0, %s142
      %s159 = sphi 0, %s143
      %s169 = sphi 0, %s171
      %s172 = sphi 0, %s169
      %s173 = sphi 0, %s172
      %s189 = sphi 0, %s173
      %s193 = sphi 0, %s193
      %s195 = sphi 0, %s193
      %s196 = sphi 0, %s195
      %s210 = sphi 0, %s196
      %s218 = sphi 0, %s220
      %s221 = sphi 0, %s218
      %s222 = sphi 0, %s221
      %s238 = sphi 0, %s222
    $region4: #{self_attention_delta_block.3} parent=1 // loop_header_branch
      %27 = sbr.rel (%p25) target = $region8
    $region5: #{self_attention_delta_block.3} parent=1 // loop_body
      %s29 = ssub.s32 %s24, 1
      %s30 = ssub.s32 %s24, 2
      %s40 = sadd.s32 1, %s33
      %p41 = scmp.ge.s32.totalorder %s40, 1
      %s42 = scalar_select %p41, 0, %s40
      %s43 = sadd.s32 1, %s32
      %s44 = scalar_select %p41, %s43, %s32
      %p45 = scmp.ge.s32.totalorder %s44, 1
      %s46 = scalar_select %p45, 0, %s44
      %s47 = sadd.s32 1, %s31
      %s48 = scalar_select %p45, %s47, %s31
      %p49 = scmp.ge.s32.totalorder %s48, 2
      %s50 = scalar_select %p49, 0, %s48
      %s51 = ssub.s32 %s31, %s50
      %s52 = ssub.s32 %s32, %s46
      %s53 = sor.u32 %s51, %s52
      %p54 = scmp.eq.s32.totalorder %s53, 0
      %s56 = sadd.s32 %s55, 1
      %s57 = scalar_select %p54, %s55, %s56
      %p60 = pneg %p54
      %p61 = scmp.eq.s32.totalorder %s24, 1
      %p62 = por %p60, %p61
      %p63 = scmp.ne.s32.totalorder %s55, %s58
      %p64 = scmp.eq.s32.totalorder %s24, 0
      %p65 = por %p63, %p64
      %p66 = scmp.ne.s32.totalorder %s55, %s58
      %p67 = scmp.eq.s32.totalorder %s29, 1
      %p68 = por %p66, %p67
      %p69 = scmp.ne.s32.totalorder %s58, %s59
      %p70 = scmp.eq.s32.totalorder %s29, 0
      %p71 = por %p69, %p70
      %p72 = scmp.ne.s32.totalorder %s58, %s59
      %p73 = scmp.eq.s32.totalorder %s30, 1
      %p74 = por %p72, %p73
      %p76 = scmp.ne.s32.totalorder %s59, %s75
      %p77 = scmp.eq.s32.totalorder %s30, 0
      %p78 = por %p76, %p77
      %s79 = ssub.s32 %s31, %s50
      %s80 = ssub.s32 %s32, %s46
      %s81 = sor.u32 %s79, %s80
      %p82 = scmp.eq.s32.totalorder %s81, 0
      %s84 = sadd.s32 %s83, 1
      %s85 = scalar_select %p82, %s83, %s84
      %p88 = pneg %p82
      %p89 = scmp.eq.s32.totalorder %s24, 1
      %p90 = por %p88, %p89
      %p91 = scmp.ne.s32.totalorder %s83, %s86
      %p92 = scmp.eq.s32.totalorder %s24, 0
      %p93 = por %p91, %p92
      %p94 = scmp.ne.s32.totalorder %s83, %s86
      %p95 = scmp.eq.s32.totalorder %s29, 1
      %p96 = por %p94, %p95
      %p97 = scmp.ne.s32.totalorder %s86, %s87
      %p98 = scmp.eq.s32.totalorder %s29, 0
      %p99 = por %p97, %p98
      %p100 = scmp.ne.s32.totalorder %s86, %s87
      %p101 = scmp.eq.s32.totalorder %s30, 1
      %p102 = por %p100, %p101
      %p104 = scmp.ne.s32.totalorder %s87, %s103
      %p105 = scmp.eq.s32.totalorder %s30, 0
      %p106 = por %p104, %p105
      %s107 = ssub.s32 %s31, %s50
      %s108 = ssub.s32 %s33, %s42
      %s109 = sor.u32 %s107, %s108
      %p110 = scmp.eq.s32.totalorder %s109, 0
      %s112 = sadd.s32 %s111, 1
      %s113 = scalar_select %p110, %s111, %s112
      %p116 = pneg %p110
      %p117 = scmp.eq.s32.totalorder %s24, 1
      %p118 = por %p116, %p117
      %p119 = scmp.ne.s32.totalorder %s111, %s114
      %p120 = scmp.eq.s32.totalorder %s24, 0
      %p121 = por %p119, %p120
      %p122 = scmp.ne.s32.totalorder %s111, %s114
      %p123 = scmp.eq.s32.totalorder %s29, 1
      %p124 = por %p122, %p123
      %p125 = scmp.ne.s32.totalorder %s114, %s115
      %p126 = scmp.eq.s32.totalorder %s29, 0
      %p127 = por %p125, %p126
      %p128 = scmp.ne.s32.totalorder %s114, %s115
      %p129 = scmp.eq.s32.totalorder %s30, 1
      %p130 = por %p128, %p129
      %p132 = scmp.ne.s32.totalorder %s115, %s131
      %p133 = scmp.eq.s32.totalorder %s30, 0
      %p134 = por %p132, %p133
      %s135 = ssub.s32 %s31, %s50
      %s136 = ssub.s32 %s33, %s42
      %s137 = sor.u32 %s135, %s136
      %p138 = scmp.eq.s32.totalorder %s137, 0
      %s140 = sadd.s32 %s139, 1
      %s141 = scalar_select %p138, %s139, %s140
      %p144 = pneg %p138
      %p145 = scmp.eq.s32.totalorder %s24, 1
      %p146 = por %p144, %p145
      %p147 = scmp.ne.s32.totalorder %s139, %s142
      %p148 = scmp.eq.s32.totalorder %s24, 0
      %p149 = por %p147, %p148
      %p150 = scmp.ne.s32.totalorder %s139, %s142
      %p151 = scmp.eq.s32.totalorder %s29, 1
      %p152 = por %p150, %p151
      %p153 = scmp.ne.s32.totalorder %s142, %s143
      %p154 = scmp.eq.s32.totalorder %s29, 0
      %p155 = por %p153, %p154
      %p156 = scmp.ne.s32.totalorder %s142, %s143
      %p157 = scmp.eq.s32.totalorder %s30, 1
      %p158 = por %p156, %p157
      %p160 = scmp.ne.s32.totalorder %s143, %s159
      %p161 = scmp.eq.s32.totalorder %s30, 0
      %p162 = por %p160, %p161
      %s163 = ssub.s32 %s31, %s50
      %s164 = ssub.s32 %s32, %s46
      %s165 = sor.u32 %s163, %s164
      %s166 = ssub.s32 %s33, %s42
      %s167 = sor.u32 %s165, %s166
      %p168 = scmp.eq.s32.totalorder %s167, 0
      %s170 = sadd.s32 %s169, 1
      %s171 = scalar_select %p168, %s169, %s170
      %p174 = pneg %p168
      %p175 = scmp.eq.s32.totalorder %s24, 1
      %p176 = por %p174, %p175
      %p177 = scmp.ne.s32.totalorder %s169, %s172
      %p178 = scmp.eq.s32.totalorder %s24, 0
      %p179 = por %p177, %p178
      %p180 = scmp.ne.s32.totalorder %s169, %s172
      %p181 = scmp.eq.s32.totalorder %s29, 1
      %p182 = por %p180, %p181
      %p183 = scmp.ne.s32.totalorder %s172, %s173
      %p184 = scmp.eq.s32.totalorder %s29, 0
      %p185 = por %p183, %p184
      %p186 = scmp.ne.s32.totalorder %s172, %s173
      %p187 = scmp.eq.s32.totalorder %s30, 1
      %p188 = por %p186, %p187
      %p190 = scmp.ne.s32.totalorder %s173, %s189
      %p191 = scmp.eq.s32.totalorder %s30, 0
      %p192 = por %p190, %p191
      %s194 = sadd.s32 %s193, 1
      %p197 = scmp.eq.s32.totalorder %s24, 1
      %p198 = scmp.ne.s32.totalorder %s193, %s195
      %p199 = scmp.eq.s32.totalorder %s24, 0
      %p200 = por %p198, %p199
      %p201 = scmp.ne.s32.totalorder %s193, %s195
      %p202 = scmp.eq.s32.totalorder %s29, 1
      %p203 = por %p201, %p202
      %p204 = scmp.ne.s32.totalorder %s195, %s196
      %p205 = scmp.eq.s32.totalorder %s29, 0
      %p206 = por %p204, %p205
      %p207 = scmp.ne.s32.totalorder %s195, %s196
      %p208 = scmp.eq.s32.totalorder %s30, 1
      %p209 = por %p207, %p208
      %p211 = scmp.ne.s32.totalorder %s196, %s210
      %p212 = scmp.eq.s32.totalorder %s30, 0
      %p213 = por %p211, %p212
      %s214 = ssub.s32 %s31, %s50
      %s215 = ssub.s32 %s32, %s46
      %s216 = sor.u32 %s214, %s215
      %p217 = scmp.eq.s32.totalorder %s216, 0
      %s219 = sadd.s32 %s218, 1
      %s220 = scalar_select %p217, %s218, %s219
      %p223 = pneg %p217
      %p224 = scmp.eq.s32.totalorder %s24, 1
      %p225 = por %p223, %p224
      %p226 = scmp.ne.s32.totalorder %s218, %s221
      %p227 = scmp.eq.s32.totalorder %s24, 0
      %p228 = por %p226, %p227
      %p229 = scmp.ne.s32.totalorder %s218, %s221
      %p230 = scmp.eq.s32.totalorder %s29, 1
      %p231 = por %p229, %p230
      %p232 = scmp.ne.s32.totalorder %s221, %s222
      %p233 = scmp.eq.s32.totalorder %s29, 0
      %p234 = por %p232, %p233
      %p235 = scmp.ne.s32.totalorder %s221, %s222
      %p236 = scmp.eq.s32.totalorder %s30, 1
      %p237 = por %p235, %p236
      %p239 = scmp.ne.s32.totalorder %s222, %s238
      %p240 = scmp.eq.s32.totalorder %s30, 0
      %p241 = por %p239, %p240
      %p242 = scmp.le.s32.totalorder 1, %s24
      %p243 = scmp.lt.s32.totalorder %s24, 3
      %p244 = pnand %p242, %p243
      %p245 = pneg %p244
      // Predicated region
      $region9: #{self_attention_delta_block.3} parent=5 // pred_check
        _
      $region10: #{self_attention_delta_block.3} parent=5 // pred_check_branch
        %247 = sbr.rel (%p244) target = $region12
      $region11: #{self_attention_delta_block.3} parent=5 // pred_region
        %s248 = ssub.s32 %s24, 1
        // Predicated region
        $region13: #{self_attention_delta_block.3} parent=11 // pred_check
          %p249 = pneg %p206
        $region14: #{self_attention_delta_block.3} parent=11 // pred_check_branch
          %251 = sbr.rel (%p249) target = $region16
        $region15: #{self_attention_delta_block.3} parent=11 // pred_region
          _
        $region16: #{self_attention_delta_block.3} parent=11 // pred_fallthru
          _
      $region12: #{self_attention_delta_block.3} parent=5 // pred_fallthru
        _
      %p252 = scmp.lt.s32.totalorder %s24, 2
      // Predicated region
      $region17: #{self_attention_delta_block.3} parent=5 // pred_check
        %p253 = pneg %p252
      $region18: #{self_attention_delta_block.3} parent=5 // pred_check_branch
        %255 = sbr.rel (%p253) target = $region20
      $region19: #{self_attention_delta_block.3} parent=5 // pred_region
        // Predicated region
        $region21: #{self_attention_delta_block.3} parent=19 // pred_check
          %p256 = pneg %p65
        $region22: #{self_attention_delta_block.3} parent=19 // pred_check_branch
          %258 = sbr.rel (%p256) target = $region24
        $region23: #{self_attention_delta_block.3} parent=19 // pred_region
          %p259 = scmp.lt.s32.totalorder %s31, 1
          %s260 = scalar_select %p259, %s31, 1
          %p261 = scmp.lt.s32.totalorder %s32, 0
          %s262 = scalar_select %p261, %s32, 0
          %s263 = sadd.s32 %s262, %s260
          %s264 = smul.addr %s263, 8
          %s265 = scalar_lea.vmem %s1, %s264
        $region24: #{self_attention_delta_block.3} parent=19 // pred_fallthru
          _
        // Predicated region
        $region25: #{self_attention_delta_block.3} parent=19 // pred_check
          %p266 = pneg %p93
        $region26: #{self_attention_delta_block.3} parent=19 // pred_check_branch
          %268 = sbr.rel (%p266) target = $region28
        $region27: #{self_attention_delta_block.3} parent=19 // pred_region
          %p269 = scmp.lt.s32.totalorder %s31, 1
          %s270 = scalar_select %p269, %s31, 1
          %p271 = scmp.lt.s32.totalorder %s32, 0
          %s272 = scalar_select %p271, %s32, 0
          %s273 = smul.addr %s270, 4
          %s274 = sadd.s32 %s272, %s273
          %s275 = smul.addr %s274, 4
          %s276 = scalar_lea.vmem %s2, %s275
        $region28: #{self_attention_delta_block.3} parent=19 // pred_fallthru
          _
        // Predicated region
        $region29: #{self_attention_delta_block.3} parent=19 // pred_check
          %p277 = pneg %p121
        $region30: #{self_attention_delta_block.3} parent=19 // pred_check_branch
          %279 = sbr.rel (%p277) target = $region32
        $region31: #{self_attention_delta_block.3} parent=19 // pred_region
          %p280 = scmp.lt.s32.totalorder %s31, 1
          %s281 = scalar_select %p280, %s31, 1
          %p282 = scmp.lt.s32.totalorder %s33, 0
          %s283 = scalar_select %p282, %s33, 0
          %s284 = smul.addr %s281, 4
          %s285 = sadd.s32 %s283, %s284
          %s286 = smul.addr %s285, 4
          %s287 = scalar_lea.vmem %s3, %s286
        $region32: #{self_attention_delta_block.3} parent=19 // pred_fallthru
          _
        // Predicated region
        $region33: #{self_attention_delta_block.3} parent=19 // pred_check
          %p288 = pneg %p149
        $region34: #{self_attention_delta_block.3} parent=19 // pred_check_branch
          %290 = sbr.rel (%p288) target = $region36
        $region35: #{self_attention_delta_block.3} parent=19 // pred_region
          %p291 = scmp.lt.s32.totalorder %s31, 1
          %s292 = scalar_select %p291, %s31, 1
          %p293 = scmp.lt.s32.totalorder %s33, 0
          %s294 = scalar_select %p293, %s33, 0
          %s295 = smul.addr %s292, 4
          %s296 = sadd.s32 %s294, %s295
          %s297 = smul.addr %s296, 4
          %s298 = scalar_lea.vmem %s4, %s297
        $region36: #{self_attention_delta_block.3} parent=19 // pred_fallthru
          _
        // Predicated region
        $region37: #{self_attention_delta_block.3} parent=19 // pred_check
          %p299 = pneg %p179
        $region38: #{self_attention_delta_block.3} parent=19 // pred_check_branch
          %301 = sbr.rel (%p299) target = $region40
        $region39: #{self_attention_delta_block.3} parent=19 // pred_region
          %p302 = scmp.lt.s32.totalorder %s31, 1
          %s303 = scalar_select %p302, %s31, 1
          %p304 = scmp.lt.s32.totalorder %s32, 0
          %s305 = scalar_select %p304, %s32, 0
          %p306 = scmp.lt.s32.totalorder %s33, 0
          %s307 = scalar_select %p306, %s33, 0
          %s308 = sadd.s32 %s307, %s305
          %s309 = sadd.s32 %s308, %s303
          %s310 = smul.addr %s309, 2
          %s311 = scalar_lea.vmem %s5, %s310
        $region40: #{self_attention_delta_block.3} parent=19 // pred_fallthru
          _
      $region20: #{self_attention_delta_block.3} parent=5 // pred_fallthru
        _
      %p312 = scmp.le.s32.totalorder 1, %s24
      %p313 = scmp.lt.s32.totalorder %s24, 3
      %p314 = pnand %p312, %p313
      %p315 = pneg %p314
      // Predicated region
      $region41: #{self_attention_delta_block.3} parent=5 // pred_check
        _
      $region42: #{self_attention_delta_block.3} parent=5 // pred_check_branch
        %317 = sbr.rel (%p314) target = $region44
      $region43: #{self_attention_delta_block.3} parent=5 // pred_region
        %s318 = ssub.s32 %s24, 1
        %p319 = scmp.lt.s32.totalorder %s34, 1
        %s320 = scalar_select %p319, %s34, 1
        %p321 = scmp.lt.s32.totalorder %s35, 0
        %s322 = scalar_select %p321, %s35, 0
        %s323 = sadd.s32 %s322, %s320
        %s324 = smul.addr %s323, 8
        %s325 = scalar_lea.vmem %s1, %s324
        %p326 = pneg %p71
        %p327 = pneg %p68
        %p328 = scmp.lt.s32.totalorder %s34, 1
        %s329 = scalar_select %p328, %s34, 1
        %p330 = scmp.lt.s32.totalorder %s35, 0
        %s331 = scalar_select %p330, %s35, 0
        %s332 = smul.addr %s329, 4
        %s333 = sadd.s32 %s331, %s332
        %s334 = smul.addr %s333, 4
        %s335 = scalar_lea.vmem %s2, %s334
        %p336 = pneg %p99
        %p337 = pneg %p96
        %p338 = scmp.lt.s32.totalorder %s34, 1
        %s339 = scalar_select %p338, %s34, 1
        %p340 = scmp.lt.s32.totalorder %s36, 0
        %s341 = scalar_select %p340, %s36, 0
        %s342 = smul.addr %s339, 4
        %s343 = sadd.s32 %s341, %s342
        %s344 = smul.addr %s343, 4
        %s345 = scalar_lea.vmem %s3, %s344
        %p346 = pneg %p127
        %p347 = pneg %p124
        %p348 = scmp.lt.s32.totalorder %s34, 1
        %s349 = scalar_select %p348, %s34, 1
        %p350 = scmp.lt.s32.totalorder %s36, 0
        %s351 = scalar_select %p350, %s36, 0
        %s352 = smul.addr %s349, 4
        %s353 = sadd.s32 %s351, %s352
        %s354 = smul.addr %s353, 4
        %s355 = scalar_lea.vmem %s4, %s354
        %p356 = pneg %p155
        %p357 = pneg %p152
        %p358 = scmp.lt.s32.totalorder %s34, 1
        %s359 = scalar_select %p358, %s34, 1
        %p360 = scmp.lt.s32.totalorder %s35, 0
        %s361 = scalar_select %p360, %s35, 0
        %p362 = scmp.lt.s32.totalorder %s36, 0
        %s363 = scalar_select %p362, %s36, 0
        %s364 = sadd.s32 %s363, %s361
        %s365 = sadd.s32 %s364, %s359
        %s366 = smul.addr %s365, 2
        %s367 = scalar_lea.vmem %s5, %s366
        %p368 = pneg %p185
        %p369 = pneg %p182
        %p370 = pneg %p206
        %p371 = pneg %p203
        %p372 = pneg %p234
        %p373 = pneg %p231
        %s374 = sand.u32 %s221, 1
        %s375 = scalar_lea.sflag [#allocation8], %s374
        %s376 = sand.u32 %s221, 1
        %s377 = smul.addr %s376, 8
        %s378 = scalar_lea.vmem [#allocation7], %s377
        %p379 = scmp.lt.s32.totalorder %s34, 1
        %s380 = scalar_select %p379, %s34, 1
        %p381 = scmp.lt.s32.totalorder %s35, 0
        %s382 = scalar_select %p381, %s35, 0
        %s383 = sadd.s32 %s382, %s380
        %s384 = smul.addr %s383, 8
        %s385 = scalar_lea.vmem %s1, %s384
        %p386 = scmp.lt.s32.totalorder %s34, 1
        %s387 = scalar_select %p386, %s34, 1
        %p388 = scmp.lt.s32.totalorder %s35, 0
        %s389 = scalar_select %p388, %s35, 0
        %s390 = smul.addr %s387, 4
        %s391 = sadd.s32 %s389, %s390
        %s392 = smul.addr %s391, 4
        %s393 = scalar_lea.vmem %s2, %s392
        %p394 = scmp.lt.s32.totalorder %s34, 1
        %s395 = scalar_select %p394, %s34, 1
        %p396 = scmp.lt.s32.totalorder %s36, 0
        %s397 = scalar_select %p396, %s36, 0
        %s398 = smul.addr %s395, 4
        %s399 = sadd.s32 %s397, %s398
        %s400 = smul.addr %s399, 4
        %s401 = scalar_lea.vmem %s3, %s400
        %p402 = scmp.lt.s32.totalorder %s34, 1
        %s403 = scalar_select %p402, %s34, 1
        %p404 = scmp.lt.s32.totalorder %s36, 0
        %s405 = scalar_select %p404, %s36, 0
        %s406 = smul.addr %s403, 4
        %s407 = sadd.s32 %s405, %s406
        %s408 = smul.addr %s407, 4
        %s409 = scalar_lea.vmem %s4, %s408
        %p410 = scmp.lt.s32.totalorder %s34, 1
        %s411 = scalar_select %p410, %s34, 1
        %p412 = scmp.lt.s32.totalorder %s35, 0
        %s413 = scalar_select %p412, %s35, 0
        %p414 = scmp.lt.s32.totalorder %s36, 0
        %s415 = scalar_select %p414, %s36, 0
        %s416 = sadd.s32 %s415, %s413
        %s417 = sadd.s32 %s416, %s411
        %s418 = smul.addr %s417, 2
        %s419 = scalar_lea.vmem %s5, %s418
        %p421 = scmp.eq.s32.totalorder %s36, 0
        // Predicated region
        $region45: #{self_attention_delta_block.3} parent=43 // pred_check
          %p422 = pneg %p421
        $region46: #{self_attention_delta_block.3} parent=43 // pred_check_branch
          %424 = sbr.rel (%p422) target = $region48
        $region47: #{self_attention_delta_block.3} parent=43 // pred_region
          %vm425 = vcmask 7168
          %426 = vst.msk [vmem:[#allocation2] sm:$0xff] %vm425, -1e+30
          %427 = vst.msk [vmem:[#allocation2 + $0x8] sm:$0xff] %vm425, -1e+30
          %428 = vst.msk [vmem:[#allocation2 + $0x10] sm:$0xff] %vm425, -1e+30
          %429 = vst.msk [vmem:[#allocation2 + $0x18] sm:$0xff] %vm425, -1e+30
          %430 = vst.msk [vmem:[#allocation3] sm:$0xff] %vm425, 0.0
          %431 = vst.msk [vmem:[#allocation3 + $0x8] sm:$0xff] %vm425, 0.0
          %432 = vst.msk [vmem:[#allocation3 + $0x10] sm:$0xff] %vm425, 0.0
          %433 = vst.msk [vmem:[#allocation3 + $0x18] sm:$0xff] %vm425, 0.0
          %vm434 = vcmask 64512
          %435 = vst.msk [vmem:[#allocation4] sm:$0xff] %vm434, 0.0
          %436 = vst.msk [vmem:[#allocation4 + $0x8] sm:$0xff] %vm434, 0.0
          %437 = vst.msk [vmem:[#allocation4 + $0x10] sm:$0xff] %vm434, 0.0
          %438 = vst.msk [vmem:[#allocation4 + $0x18] sm:$0xff] %vm434, 0.0
        $region48: #{self_attention_delta_block.3} parent=43 // pred_fallthru
          _
        %s439 = sadd.s32 %s34, %s35
        %s440 = sadd.s32 %s439, %s36
        %s441 = sld [smem:[#allocation6 + %s440]]
        %p442 = scmp.gt.s32.totalorder %s441, 0
        // Predicated region
        $region49: #{self_attention_delta_block.3} parent=43 // pred_check
          %p443 = pneg %p442
        $region50: #{self_attention_delta_block.3} parent=43 // pred_check_branch
          %445 = sbr.rel (%p443) target = $region52
        $region51: #{self_attention_delta_block.3} parent=43 // pred_region
          %v446 = vld [vmem:[%s393] sm:$0xf]
          %v447 = vld [vmem:[%s393 + $0x4] sm:$0xf]
          %v448 = vld [vmem:[%s393 + $0x8] sm:$0xf]
          %v449 = vld [vmem:[%s393 + $0xc] sm:$0xf]
          %v450 = vld [vmem:[%s401] sm:$0xf]
          %v451 = vld [vmem:[%s401 + $0x4] sm:$0xf]
          %v452 = vld [vmem:[%s401 + $0x8] sm:$0xf]
          %v453 = vld [vmem:[%s401 + $0xc] sm:$0xf]
          %v454 = vld [vmem:[%s409] sm:$0xf]
          %v455 = vld [vmem:[%s409 + $0x4] sm:$0xf]
          %v456 = vld [vmem:[%s409 + $0x8] sm:$0xf]
          %v457 = vld [vmem:[%s409 + $0xc] sm:$0xf]
          %v458 = vld [vmem:[%s419] sm:$0x3]
          %v459 = vunpack.c.0.s8 %v458
          %v460 = vcvt.s32.f32 %v459
          %vm461 = vcmp.gt.f32.partialorder %v460, 0.0
          %vm462 = vcmask 64512
          %v464 = vsel %vm462, %v446, 0
          %v467 = vsel %vm462, %v450, 0
          %469 = vmatpush.bf16.xpose.msra.mxu0 0
          %470 = vmatpush.bf16.xpose.msra.mxu0 0
          %471 = vmatpush.bf16.xpose.msra.mxu0 0
          %472 = vmatpush.bf16.xpose.msra.mxu0 0
          %473 = vmatpush.bf16.xpose.msra.mxu0 0
          %474 = vmatpush.bf16.xpose.msra.mxu0 0
          %475 = vmatpush.bf16.xpose.msra.mxu0 0
          %476 = vmatpush.bf16.xpose.msra.mxu0 %v467
          %477 = vmatmul.bf16.gmra.mxu0 %v464
          %v478 = vpop.f32.mrf.mxu0
          %v479 = vadd.f32 0.0, %v478
          %v480 = vpop.f32.mrf.mxu0
          %481 = vdwg.mxu0
          %v483 = vsel %vm462, %v447, 0
          %v486 = vsel %vm462, %v451, 0
          %488 = vmatpush.bf16.xpose.msra.mxu0 0
          %489 = vmatpush.bf16.xpose.msra.mxu0 0
          %490 = vmatpush.bf16.xpose.msra.mxu0 0
          %491 = vmatpush.bf16.xpose.msra.mxu0 0
          %492 = vmatpush.bf16.xpose.msra.mxu0 0
          %493 = vmatpush.bf16.xpose.msra.mxu0 0
          %494 = vmatpush.bf16.xpose.msra.mxu0 0
          %495 = vmatpush.bf16.xpose.msra.mxu0 %v486
          %496 = vmatmul.bf16.gmra.mxu0 %v483
          %v497 = vpop.f32.mrf.mxu0
          %v498 = vadd.f32 0.0, %v497
          %v499 = vpop.f32.mrf.mxu0
          %500 = vdwg.mxu0
          %v502 = vsel %vm462, %v448, 0
          %v505 = vsel %vm462, %v452, 0
          %507 = vmatpush.bf16.xpose.msra.mxu0 0
          %508 = vmatpush.bf16.xpose.msra.mxu0 0
          %509 = vmatpush.bf16.xpose.msra.mxu0 0
          %510 = vmatpush.bf16.xpose.msra.mxu0 0
          %511 = vmatpush.bf16.xpose.msra.mxu0 0
          %512 = vmatpush.bf16.xpose.msra.mxu0 0
          %513 = vmatpush.bf16.xpose.msra.mxu0 0
          %514 = vmatpush.bf16.xpose.msra.mxu0 %v505
          %515 = vmatmul.bf16.gmra.mxu0 %v502
          %v516 = vpop.f32.mrf.mxu0
          %v517 = vadd.f32 0.0, %v516
          %v518 = vpop.f32.mrf.mxu0
          %519 = vdwg.mxu0
          %v521 = vsel %vm462, %v449, 0
          %v524 = vsel %vm462, %v453, 0
          %526 = vmatpush.bf16.xpose.msra.mxu0 0
          %527 = vmatpush.bf16.xpose.msra.mxu0 0
          %528 = vmatpush.bf16.xpose.msra.mxu0 0
          %529 = vmatpush.bf16.xpose.msra.mxu0 0
          %530 = vmatpush.bf16.xpose.msra.mxu0 0
          %531 = vmatpush.bf16.xpose.msra.mxu0 0
          %532 = vmatpush.bf16.xpose.msra.mxu0 0
          %533 = vmatpush.bf16.xpose.msra.mxu0 %v524
          %534 = vmatmul.bf16.gmra.mxu0 %v521
          %v535 = vpop.f32.mrf.mxu0
          %v536 = vadd.f32 0.0, %v535
          %v537 = vpop.f32.mrf.mxu0
          %538 = vdwg.mxu0
          %v539 = vsel %vm461, 1, 0
          %vm540 = vcmp.eq.s32.totalorder %v539, 1
          %v541 = vsel %vm540, %v479, -1e+30
          %v542 = vsel %vm540, %v498, -1e+30
          %v543 = vsel %vm540, %v517, -1e+30
          %v544 = vsel %vm540, %v536, -1e+30
          %v545 = vld [vmem:[#allocation2] sm:$0xff]
          %v546 = vld [vmem:[#allocation2 + $0x8] sm:$0xff]
          %v547 = vld [vmem:[#allocation2 + $0x10] sm:$0xff]
          %v548 = vld [vmem:[#allocation2 + $0x18] sm:$0xff]
          %v549 = vsel %vm462, %v541, -inf
          %550 = vmax.xlane.f32.xlu0 %v549
          %v551 = vpop.xlane.xlu0 %550
          %v552 = vsel %vm462, %v542, -inf
          %553 = vmax.xlane.f32.xlu0 %v552
          %v554 = vpop.xlane.xlu0 %553
          %v555 = vsel %vm462, %v543, -inf
          %556 = vmax.xlane.f32.xlu0 %v555
          %v557 = vpop.xlane.xlu0 %556
          %v558 = vsel %vm462, %v544, -inf
          %559 = vmax.xlane.f32.xlu0 %v558
          %v560 = vpop.xlane.xlu0 %559
          %v561 = vmax.f32 %v545, %v551
          %v562 = vmax.f32 %v546, %v554
          %v563 = vmax.f32 %v547, %v557
          %v564 = vmax.f32 %v548, %v560
          %v565 = vsub.f32 %v545, %v561
          %v566 = vsub.f32 %v546, %v562
          %v567 = vsub.f32 %v547, %v563
          %v568 = vsub.f32 %v548, %v564
          %v569 = vmul.f32 %v565, 1.442695
          %v570 = vpow.pop %v569
          %v571 = vmul.f32 %v566, 1.442695
          %v572 = vpow.pop %v571
          %v573 = vmul.f32 %v567, 1.442695
          %v574 = vpow.pop %v573
          %v575 = vmul.f32 %v568, 1.442695
          %v576 = vpow.pop %v575
          %578 = vset.pattern.permute.xlu0 0
          %579 = vperm.xlu0 %578, %v561
          %v580 = vpop.permute.xlu0 %579
          %583 = vset.pattern.permute.xlu0 0
          %584 = vperm.xlu0 %583, %v562
          %v585 = vpop.permute.xlu0 %584
          %588 = vset.pattern.permute.xlu0 0
          %589 = vperm.xlu0 %588, %v563
          %v590 = vpop.permute.xlu0 %589
          %593 = vset.pattern.permute.xlu0 0
          %594 = vperm.xlu0 %593, %v564
          %v595 = vpop.permute.xlu0 %594
          %v597 = vsub.f32 %v541, %v580
          %v598 = vsub.f32 %v542, %v585
          %v599 = vsub.f32 %v543, %v590
          %v600 = vsub.f32 %v544, %v595
          %v601 = vmul.f32 %v597, 1.442695
          %v602 = vpow.pop %v601
          %v603 = vmul.f32 %v598, 1.442695
          %v604 = vpow.pop %v603
          %v605 = vmul.f32 %v599, 1.442695
          %v606 = vpow.pop %v605
          %v607 = vmul.f32 %v600, 1.442695
          %v608 = vpow.pop %v607
          %v609 = vsel %vm540, %v602, 0.0
          %v610 = vsel %vm540, %v604, 0.0
          %v611 = vsel %vm540, %v606, 0.0
          %v612 = vsel %vm540, %v608, 0.0
          %v613 = vld [vmem:[#allocation3] sm:$0xff]
          %v614 = vld [vmem:[#allocation3 + $0x8] sm:$0xff]
          %v615 = vld [vmem:[#allocation3 + $0x10] sm:$0xff]
          %v616 = vld [vmem:[#allocation3 + $0x18] sm:$0xff]
          %v617 = vmul.f32 %v570, %v613
          %v618 = vmul.f32 %v572, %v614
          %v619 = vmul.f32 %v574, %v615
          %v620 = vmul.f32 %v576, %v616
          %v621 = vsel %vm462, %v609, 0.0
          %622 = vadd.xlane.f32.xlu0 %v621
          %v623 = vpop.xlane.xlu0 %622
          %v624 = vsel %vm462, %v610, 0.0
          %625 = vadd.xlane.f32.xlu0 %v624
          %v626 = vpop.xlane.xlu0 %625
          %v627 = vsel %vm462, %v611, 0.0
          %628 = vadd.xlane.f32.xlu0 %v627
          %v629 = vpop.xlane.xlu0 %628
          %v630 = vsel %vm462, %v612, 0.0
          %631 = vadd.xlane.f32.xlu0 %v630
          %v632 = vpop.xlane.xlu0 %631
          %v633 = vadd.f32 %v617, %v623
          %v634 = vadd.f32 %v618, %v626
          %v635 = vadd.f32 %v619, %v629
          %v636 = vadd.f32 %v620, %v632
          %vm637 = vcmask 7168
          %638 = vst.msk [vmem:[#allocation3] sm:$0xff] %vm637, %v633
          %639 = vst.msk [vmem:[#allocation3 + $0x8] sm:$0xff] %vm637, %v634
          %640 = vst.msk [vmem:[#allocation3 + $0x10] sm:$0xff] %vm637, %v635
          %641 = vst.msk [vmem:[#allocation3 + $0x18] sm:$0xff] %vm637, %v636
          %v642 = vld [vmem:[#allocation4] sm:$0xff]
          %v643 = vld [vmem:[#allocation4 + $0x8] sm:$0xff]
          %v644 = vld [vmem:[#allocation4 + $0x10] sm:$0xff]
          %v645 = vld [vmem:[#allocation4 + $0x18] sm:$0xff]
          %647 = vset.pattern.permute.xlu0 0
          %648 = vperm.xlu0 %647, %v570
          %v649 = vpop.permute.xlu0 %648
          %652 = vset.pattern.permute.xlu0 0
          %653 = vperm.xlu0 %652, %v572
          %v654 = vpop.permute.xlu0 %653
          %657 = vset.pattern.permute.xlu0 0
          %658 = vperm.xlu0 %657, %v574
          %v659 = vpop.permute.xlu0 %658
          %662 = vset.pattern.permute.xlu0 0
          %663 = vperm.xlu0 %662, %v576
          %v664 = vpop.permute.xlu0 %663
          %v666 = vmul.f32 %v649, %v642
          %v667 = vmul.f32 %v654, %v643
          %v668 = vmul.f32 %v659, %v644
          %v669 = vmul.f32 %v664, %v645
          %v670 = vpack.c.bf16 %v609, %v609
          %v671 = vpack.c.bf16 %v610, %v610
          %v672 = vpack.c.bf16 %v611, %v611
          %v673 = vpack.c.bf16 %v612, %v612
          %v675 = vsel %vm462, %v670, 0
          %vm677 = vcmask 1043456
          %v679 = vsel %vm677, %v454, 0
          %681 = vmatpush.bf16.msra.mxu0 0
          %682 = vmatpush.bf16.msra.mxu0 0
          %683 = vmatpush.bf16.msra.mxu0 0
          %684 = vmatpush.bf16.msra.mxu0 0
          %685 = vmatpush.bf16.msra.mxu0 0
          %686 = vmatpush.bf16.msra.mxu0 0
          %687 = vmatpush.bf16.msra.mxu0 0
          %688 = vmatpush.bf16.msra.mxu0 %v679
          %689 = vmatmul.bf16.gmra.mxu0 %v675
          %v690 = vpop.f32.mrf.mxu0
          %v691 = vadd.f32 0.0, %v690
          %v692 = vpop.f32.mrf.mxu0
          %693 = vdwg.mxu0
          %v695 = vsel %vm462, %v671, 0
          %v698 = vsel %vm677, %v455, 0
          %700 = vmatpush.bf16.msra.mxu0 0
          %701 = vmatpush.bf16.msra.mxu0 0
          %702 = vmatpush.bf16.msra.mxu0 0
          %703 = vmatpush.bf16.msra.mxu0 0
          %704 = vmatpush.bf16.msra.mxu0 0
          %705 = vmatpush.bf16.msra.mxu0 0
          %706 = vmatpush.bf16.msra.mxu0 0
          %707 = vmatpush.bf16.msra.mxu0 %v698
          %708 = vmatmul.bf16.gmra.mxu0 %v695
          %v709 = vpop.f32.mrf.mxu0
          %v710 = vadd.f32 0.0, %v709
          %v711 = vpop.f32.mrf.mxu0
          %712 = vdwg.mxu0
          %v714 = vsel %vm462, %v672, 0
          %v717 = vsel %vm677, %v456, 0
          %719 = vmatpush.bf16.msra.mxu0 0
          %720 = vmatpush.bf16.msra.mxu0 0
          %721 = vmatpush.bf16.msra.mxu0 0
          %722 = vmatpush.bf16.msra.mxu0 0
          %723 = vmatpush.bf16.msra.mxu0 0
          %724 = vmatpush.bf16.msra.mxu0 0
          %725 = vmatpush.bf16.msra.mxu0 0
          %726 = vmatpush.bf16.msra.mxu0 %v717
          %727 = vmatmul.bf16.gmra.mxu0 %v714
          %v728 = vpop.f32.mrf.mxu0
          %v729 = vadd.f32 0.0, %v728
          %v730 = vpop.f32.mrf.mxu0
          %731 = vdwg.mxu0
          %v733 = vsel %vm462, %v673, 0
          %v736 = vsel %vm677, %v457, 0
          %738 = vmatpush.bf16.msra.mxu0 0
          %739 = vmatpush.bf16.msra.mxu0 0
          %740 = vmatpush.bf16.msra.mxu0 0
          %741 = vmatpush.bf16.msra.mxu0 0
          %742 = vmatpush.bf16.msra.mxu0 0
          %743 = vmatpush.bf16.msra.mxu0 0
          %744 = vmatpush.bf16.msra.mxu0 0
          %745 = vmatpush.bf16.msra.mxu0 %v736
          %746 = vmatmul.bf16.gmra.mxu0 %v733
          %v747 = vpop.f32.mrf.mxu0
          %v748 = vadd.f32 0.0, %v747
          %v749 = vpop.f32.mrf.mxu0
          %750 = vdwg.mxu0
          %v751 = vadd.f32 %v666, %v691
          %v752 = vadd.f32 %v667, %v710
          %v753 = vadd.f32 %v668, %v729
          %v754 = vadd.f32 %v669, %v748
          %755 = vst.msk [vmem:[#allocation4] sm:$0xff] %vm462, %v751
          %756 = vst.msk [vmem:[#allocation4 + $0x8] sm:$0xff] %vm462, %v752
          %757 = vst.msk [vmem:[#allocation4 + $0x10] sm:$0xff] %vm462, %v753
          %758 = vst.msk [vmem:[#allocation4 + $0x18] sm:$0xff] %vm462, %v754
          %759 = vst.msk [vmem:[#allocation2] sm:$0xff] %vm637, %v561
          %760 = vst.msk [vmem:[#allocation2 + $0x8] sm:$0xff] %vm637, %v562
          %761 = vst.msk [vmem:[#allocation2 + $0x10] sm:$0xff] %vm637, %v563
          %762 = vst.msk [vmem:[#allocation2 + $0x18] sm:$0xff] %vm637, %v564
        $region52: #{self_attention_delta_block.3} parent=43 // pred_fallthru
          _
        // Predicated region
        $region53: #{self_attention_delta_block.3} parent=43 // pred_check
          %p763 = pneg %p421
        $region54: #{self_attention_delta_block.3} parent=43 // pred_check_branch
          %765 = sbr.rel (%p763) target = $region56
        $region55: #{self_attention_delta_block.3} parent=43 // pred_region
          %v766 = vld [vmem:[#allocation3] sm:$0xff]
          %v767 = vld [vmem:[#allocation3 + $0x8] sm:$0xff]
          %v768 = vld [vmem:[#allocation3 + $0x10] sm:$0xff]
          %v769 = vld [vmem:[#allocation3 + $0x18] sm:$0xff]
          %vm770 = vcmp.gt.f32.partialorder %v766, 0.0
          %vm771 = vcmp.gt.f32.partialorder %v767, 0.0
          %vm772 = vcmp.gt.f32.partialorder %v768, 0.0
          %vm773 = vcmp.gt.f32.partialorder %v769, 0.0
          %v774 = vrcp.pop %v766
          %v775 = vrcp.pop %v767
          %v776 = vrcp.pop %v768
          %v777 = vrcp.pop %v769
          %v778 = vsel %vm770, %v774, 0.0
          %v779 = vsel %vm771, %v775, 0.0
          %v780 = vsel %vm772, %v776, 0.0
          %v781 = vsel %vm773, %v777, 0.0
          %v782 = vld [vmem:[#allocation4] sm:$0xff]
          %v783 = vld [vmem:[#allocation4 + $0x8] sm:$0xff]
          %v784 = vld [vmem:[#allocation4 + $0x10] sm:$0xff]
          %v785 = vld [vmem:[#allocation4 + $0x18] sm:$0xff]
          %787 = vset.pattern.permute.xlu0 0
          %788 = vperm.xlu0 %787, %v778
          %v789 = vpop.permute.xlu0 %788
          %792 = vset.pattern.permute.xlu0 0
          %793 = vperm.xlu0 %792, %v779
          %v794 = vpop.permute.xlu0 %793
          %797 = vset.pattern.permute.xlu0 0
          %798 = vperm.xlu0 %797, %v780
          %v799 = vpop.permute.xlu0 %798
          %802 = vset.pattern.permute.xlu0 0
          %803 = vperm.xlu0 %802, %v781
          %v804 = vpop.permute.xlu0 %803
          %v806 = vmul.f32 %v782, %v789
          %v807 = vmul.f32 %v783, %v794
          %v808 = vmul.f32 %v784, %v799
          %v809 = vmul.f32 %v785, %v804
          %v810 = vpack.c.bf16 %v806, %v806
          %v811 = vpack.c.bf16 %v807, %v807
          %v812 = vpack.c.bf16 %v808, %v808
          %v813 = vpack.c.bf16 %v809, %v809
          %v814 = vld [vmem:[%s385] sm:$0xff]
          %v815 = vld [vmem:[%s6] sm:$0xf]
          %vm816 = vcmask 64512
          %v818 = vsel %vm816, %v810, 0
          %vm820 = vcmask 1043456
          %v822 = vsel %vm820, %v815, 0
          %824 = vmatpush.bf16.msra.mxu0 0
          %825 = vmatpush.bf16.msra.mxu0 0
          %826 = vmatpush.bf16.msra.mxu0 0
          %827 = vmatpush.bf16.msra.mxu0 0
          %828 = vmatpush.bf16.msra.mxu0 0
          %829 = vmatpush.bf16.msra.mxu0 0
          %830 = vmatpush.bf16.msra.mxu0 0
          %831 = vmatpush.bf16.msra.mxu0 %v822
          %832 = vmatmul.bf16.gmra.mxu0 %v818
          %v833 = vpop.f32.mrf.mxu0
          %v834 = vadd.f32 0.0, %v833
          %v835 = vpop.f32.mrf.mxu0
          %836 = vdwg.mxu0
          %v837 = vadd.f32 %v814, %v834
          %s838 = scalar_lea.vmem %s6, 4
          %v839 = vld [vmem:[%s838] sm:$0xf]
          %v841 = vsel %vm816, %v811, 0
          %v844 = vsel %vm820, %v839, 0
          %846 = vmatpush.bf16.msra.mxu0 0
          %847 = vmatpush.bf16.msra.mxu0 0
          %848 = vmatpush.bf16.msra.mxu0 0
          %849 = vmatpush.bf16.msra.mxu0 0
          %850 = vmatpush.bf16.msra.mxu0 0
          %851 = vmatpush.bf16.msra.mxu0 0
          %852 = vmatpush.bf16.msra.mxu0 0
          %853 = vmatpush.bf16.msra.mxu0 %v844
          %854 = vmatmul.bf16.gmra.mxu0 %v841
          %v855 = vpop.f32.mrf.mxu0
          %v856 = vadd.f32 0.0, %v855
          %v857 = vpop.f32.mrf.mxu0
          %858 = vdwg.mxu0
          %v859 = vadd.f32 %v837, %v856
          %s860 = scalar_lea.vmem %s6, 8
          %v861 = vld [vmem:[%s860] sm:$0xf]
          %v863 = vsel %vm816, %v812, 0
          %v866 = vsel %vm820, %v861, 0
          %868 = vmatpush.bf16.msra.mxu0 0
          %869 = vmatpush.bf16.msra.mxu0 0
          %870 = vmatpush.bf16.msra.mxu0 0
          %871 = vmatpush.bf16.msra.mxu0 0
          %872 = vmatpush.bf16.msra.mxu0 0
          %873 = vmatpush.bf16.msra.mxu0 0
          %874 = vmatpush.bf16.msra.mxu0 0
          %875 = vmatpush.bf16.msra.mxu0 %v866
          %876 = vmatmul.bf16.gmra.mxu0 %v863
          %v877 = vpop.f32.mrf.mxu0
          %v878 = vadd.f32 0.0, %v877
          %v879 = vpop.f32.mrf.mxu0
          %880 = vdwg.mxu0
          %v881 = vadd.f32 %v859, %v878
          %s882 = scalar_lea.vmem %s6, 12
          %v883 = vld [vmem:[%s882] sm:$0xf]
          %v885 = vsel %vm816, %v813, 0
          %v888 = vsel %vm820, %v883, 0
          %890 = vmatpush.bf16.msra.mxu0 0
          %891 = vmatpush.bf16.msra.mxu0 0
          %892 = vmatpush.bf16.msra.mxu0 0
          %893 = vmatpush.bf16.msra.mxu0 0
          %894 = vmatpush.bf16.msra.mxu0 0
          %895 = vmatpush.bf16.msra.mxu0 0
          %896 = vmatpush.bf16.msra.mxu0 0
          %897 = vmatpush.bf16.msra.mxu0 %v888
          %898 = vmatmul.bf16.gmra.mxu0 %v885
          %v899 = vpop.f32.mrf.mxu0
          %v900 = vadd.f32 0.0, %v899
          %v901 = vpop.f32.mrf.mxu0
          %902 = vdwg.mxu0
          %v903 = vadd.f32 %v881, %v900
          %vm904 = vcmask 261120
          %905 = vst.msk [vmem:[%s378] sm:$0xff] %vm904, %v903
        $region56: #{self_attention_delta_block.3} parent=43 // pred_fallthru
          _
        %s906 = sand.u32 %s221, 1
        %s907 = scalar_lea.sflag [#allocation8], %s906
        %s908 = sand.u32 %s221, 1
        %s909 = smul.addr %s908, 8
        %s910 = scalar_lea.vmem [#allocation7], %s909
        // Predicated region
        $region57: #{self_attention_delta_block.3} parent=43 // pred_check
          %p911 = pneg %p231
        $region58: #{self_attention_delta_block.3} parent=43 // pred_check_branch
          %913 = sbr.rel (%p911) target = $region60
        $region59: #{self_attention_delta_block.3} parent=43 // pred_region
          %915 = vsyncadd %s907, 0
          %s916 = sadd.s32 %s35, %s34
          %s917 = smul.addr %s916, 8
          %s918 = scalar_lea.hbm %s7, %s917
          %s920 = sshll.u32 %s910, 4
          %s921 = int_to_ptr.vmem [resolvable:$true] %s920
          %s922 = sshll.u32 %s918, 4
          %s923 = int_to_ptr.hbm [resolvable:$true] %s922
          %925 = dma.vmem_to_hbm [thread:$0]  %s921, 128, %s923, %s907
        $region60: #{self_attention_delta_block.3} parent=43 // pred_fallthru
          _
      $region44: #{self_attention_delta_block.3} parent=5 // pred_fallthru
        _
      %p926 = scmp.le.s32.totalorder 2, %s24
      // Predicated region
      $region61: #{self_attention_delta_block.3} parent=5 // pred_check
        %p927 = pneg %p926
      $region62: #{self_attention_delta_block.3} parent=5 // pred_check_branch
        %929 = sbr.rel (%p927) target = $region64
      $region63: #{self_attention_delta_block.3} parent=5 // pred_region
        %s930 = ssub.s32 %s24, 2
        // Predicated region
        $region65: #{self_attention_delta_block.3} parent=63 // pred_check
          %p931 = pneg %p237
        $region66: #{self_attention_delta_block.3} parent=63 // pred_check_branch
          %933 = sbr.rel (%p931) target = $region68
        $region67: #{self_attention_delta_block.3} parent=63 // pred_region
          %s934 = sand.u32 %s222, 1
          %s935 = scalar_lea.sflag [#allocation8], %s934
          %s936 = sand.u32 %s222, 1
          %s937 = smul.addr %s936, 8
          %s938 = scalar_lea.vmem [#allocation7], %s937
          %940 = dma.done %s935, 128
        $region68: #{self_attention_delta_block.3} parent=63 // pred_fallthru
          _
      $region64: #{self_attention_delta_block.3} parent=5 // pred_fallthru
        _
    $region6: #{self_attention_delta_block.3} parent=1 // loop_footer
      %s28 = sadd.s32 1, %s24
    $region7: #{self_attention_delta_block.3} parent=1 // loop_footer_branch
      %23 = sbr.rel target = $region3
    $region8: #{self_attention_delta_block.3} parent=1 // loop_exit
      _
    %941 = vsyncpa [#allocation8], 1
    %s942 = scalar_lea.sflag [#allocation8], 1
    %943 = vsyncpa %s942, 1

</llo_original>
